<compile_context>
chip_gen: v6e
topology: v6e:2x2x1
jax: 0.10.0
libtpu: 0.0.40
codegen_flags: <defaults>
</compile_context>

<pallas_src>
import functools

import jax
import jax.numpy as jnp
from jax.experimental import pallas as pl
from jax.experimental.pallas import tpu as pltpu

LEAKY_SLOPE = 0.2
BN_EPS = 1e-5
LANE = 128                      # pad Cout to lane width -> dense stores, full MXU columns
TM_MAX = 512                    # M tile (~85% of HBM roofline per guide data)
VMEM_LIMIT = 32 * 1024 * 1024   # safe on v5e/v6e/v7x with headroom


def _round_up(x, m):
    return ((x + m - 1) // m) * m


def _tiling(m):
    """Return (tile_m, padded_m, num_tiles)."""
    tm = m if m <= TM_MAX else TM_MAX
    mp = _round_up(m, tm)
    return tm, mp, mp // tm


# ----------------------------- Pallas kernels ------------------------------ #

def _conv_act_kernel(p_ref, w_ref, o_ref, *, act):
    """One (tm,K)x(K,Cp) MXU tile with fused activation."""
    y = jnp.dot(p_ref[...], w_ref[...], preferred_element_type=jnp.float32)
    if act == "leaky":
        y = jnp.where(y > 0, y, LEAKY_SLOPE * y)
    elif act == "sigmoid":
        # exp + approx reciprocal both run on the (otherwise idle) EUP slot.
        y = pl.reciprocal(1.0 + jnp.exp(-y), approx=True)
    o_ref[...] = y.astype(o_ref.dtype)


def _conv_stats_kernel(p_ref, w_ref, y_ref, stats_ref):
    """Conv tile + per-tile per-channel (sum, sum of squares) for fused BN stats."""
    y = jnp.dot(p_ref[...], w_ref[...], preferred_element_type=jnp.float32)
    y_ref[...] = y
    s = jnp.sum(y, axis=0, keepdims=True)          # (1, Cp)
    ss = jnp.sum(y * y, axis=0, keepdims=True)     # (1, Cp)
    stats_ref[...] = jnp.concatenate([s, ss], axis=0)[None, :, :]   # (1, 2, Cp)


def _bn_apply_leaky_kernel(y_ref, scale_ref, shift_ref, o_ref):
    """z = y * scale + shift, LeakyReLU(0.2); scale/shift fold mean/var/gamma/beta."""
    z = y_ref[...] * scale_ref[...] + shift_ref[...]
    o_ref[...] = jnp.where(z > 0, z, LEAKY_SLOPE * z).astype(o_ref.dtype)


# ----------------------------- kernel wrappers ----------------------------- #

def conv_act(patches, w_flat, act, out_dtype):
    """patches:(M,K) bf16, w_flat:(K,Cp) bf16 -> (Mp,Cp) out_dtype, fused activation."""
    m, k = patches.shape
    cp = w_flat.shape[1]
    tm, mp, nm = _tiling(m)
    if mp != m:
        patches = jnp.pad(patches, ((0, mp - m), (0, 0)))

    cost = pl.CostEstimate(
        flops=2 * mp * k * cp,
        transcendentals=mp * cp if act == "sigmoid" else 0,
        bytes_accessed=patches.size * patches.dtype.itemsize
        + w_flat.size * w_flat.dtype.itemsize
        + mp * cp * jnp.dtype(out_dtype).itemsize,
    )
    return pl.pallas_call(
        functools.partial(_conv_act_kernel, act=act),
        out_shape=jax.ShapeDtypeStruct((mp, cp), out_dtype),
        grid=(nm,),
        in_specs=[pl.BlockSpec((tm, k), lambda i: (i, 0)),
                  pl.BlockSpec((k, cp), lambda i: (0, 0))],   # weight stays resident
        out_specs=pl.BlockSpec((tm, cp), lambda i: (i, 0)),
        compiler_params=pltpu.CompilerParams(
            dimension_semantics=("parallel",),
            vmem_limit_bytes=VMEM_LIMIT),
        cost_estimate=cost,
    )(patches, w_flat)


def conv_bn_leaky(patches, w_flat, gamma_p, beta_p, out_dtype):
    """Conv (bf16 MXU) with fused batch-stat partials, then tiled BN+LeakyReLU apply."""
    m, k = patches.shape
    cp = w_flat.shape[1]
    tm, mp, nm = _tiling(m)
    if mp != m:
        # Zero rows: contribute exactly 0 to sum / sum-of-squares, divisor uses true m.
        patches = jnp.pad(patches, ((0, mp - m), (0, 0)))

    cost = pl.CostEstimate(
        flops=2 * mp * k * cp + 3 * mp * cp,
        transcendentals=0,
        bytes_accessed=patches.size * patches.dtype.itemsize
        + w_flat.size * w_flat.dtype.itemsize
        + mp * cp * 4 + nm * 2 * cp * 4,
    )
    y, stats = pl.pallas_call(
        _conv_stats_kernel,
        out_shape=(jax.ShapeDtypeStruct((mp, cp), jnp.float32),
                   jax.ShapeDtypeStruct((nm, 2, cp), jnp.float32)),
        grid=(nm,),
        in_specs=[pl.BlockSpec((tm, k), lambda i: (i, 0)),
                  pl.BlockSpec((k, cp), lambda i: (0, 0))],
        out_specs=(pl.BlockSpec((tm, cp), lambda i: (i, 0)),
                   pl.BlockSpec((1, 2, cp), lambda i: (i, 0, 0))),
        compiler_params=pltpu.CompilerParams(
            dimension_semantics=("parallel",),
            vmem_limit_bytes=VMEM_LIMIT),
        cost_estimate=cost,
    )(patches, w_flat)

    # Tiny reduction over per-tile partials (nm x 2 x Cp) -> batch statistics.
    total = jnp.sum(stats, axis=0)                       # (2, Cp)
    mean = total[0] / m
    var = jnp.maximum(total[1] / m - mean * mean, 0.0)   # biased var == PyTorch train mode
    inv = jax.lax.rsqrt(var + BN_EPS)
    scale = (gamma_p * inv)[None, :].astype(jnp.float32)           # (1, Cp)
    shift = (beta_p - mean * gamma_p * inv)[None, :].astype(jnp.float32)

    cost2 = pl.CostEstimate(
        flops=3 * mp * cp,
        transcendentals=0,
        bytes_accessed=mp * cp * 4 + 2 * cp * 4
        + mp * cp * jnp.dtype(out_dtype).itemsize,
    )
    return pl.pallas_call(
        _bn_apply_leaky_kernel,
        out_shape=jax.ShapeDtypeStruct((mp, cp), out_dtype),
        grid=(nm,),
        in_specs=[pl.BlockSpec((tm, cp), lambda i: (i, 0)),
                  pl.BlockSpec((1, cp), lambda i: (0, 0)),
                  pl.BlockSpec((1, cp), lambda i: (0, 0))],
        out_specs=pl.BlockSpec((tm, cp), lambda i: (i, 0)),
        compiler_params=pltpu.CompilerParams(
            dimension_semantics=("parallel",),
            vmem_limit_bytes=VMEM_LIMIT),
        cost_estimate=cost2,
    )(y, scale, shift)


# ------------------------------- JAX glue ---------------------------------- #

def extract_patches(x_nhwc, kh, kw, stride, pad):
    """NHWC -> ((N*OH*OW, Cin*KH*KW), OH, OW). K ordering is (cin, kh, kw)."""
    n, _, _, c = x_nhwc.shape
    patches = jax.lax.conv_general_dilated_patches(
        x_nhwc,
        filter_shape=(kh, kw),
        window_strides=(stride, stride),
        padding=((pad, pad), (pad, pad)),
        dimension_numbers=("NHWC", "HWIO", "NHWC"),
    )
    oh, ow = patches.shape[1], patches.shape[2]
    return patches.reshape(n * oh * ow, c * kh * kw), oh, ow


def flatten_weight(w_oihw):
    """PyTorch (Cout, Cin, KH, KW) -> (Cin*KH*KW, Cp) bf16, Cout zero-padded to 128 lanes."""
    cout = w_oihw.shape[0]
    cp = _round_up(max(cout, LANE), LANE)
    w = jnp.transpose(w_oihw, (1, 2, 3, 0)).reshape(-1, cout)   # matches patch K ordering
    w = jnp.pad(w, ((0, 0), (0, cp - cout)))
    return w.astype(jnp.bfloat16)


def pad_affine(gamma, beta, cp):
    c = gamma.shape[0]
    g = jnp.pad(gamma, (0, cp - c), constant_values=1.0).astype(jnp.float32)
    b = jnp.pad(beta, (0, cp - c)).astype(jnp.float32)
    return g, b


def init_params(key, in_dim, hidden_dim):
    k1, k2, k3, k4 = jax.random.split(key, 4)
    scale = 0.05  # deterministic synthetic init (DCGAN-style small weights)
    return {
        "w1": scale * jax.random.normal(k1, (hidden_dim, in_dim, 4, 4), jnp.float32),
        "w2": scale * jax.random.normal(k2, (hidden_dim * 2, hidden_dim, 4, 4), jnp.float32),
        "w3": scale * jax.random.normal(k3, (hidden_dim * 4, hidden_dim * 2, 4, 4), jnp.float32),
        "w4": scale * jax.random.normal(k4, (1, hidden_dim * 4, 4, 4), jnp.float32),
        # BatchNorm affine params (PyTorch default init: weight=1, bias=0)
        "gamma2": jnp.ones((hidden_dim * 2,), jnp.float32),
        "beta2": jnp.zeros((hidden_dim * 2,), jnp.float32),
        "gamma3": jnp.ones((hidden_dim * 4,), jnp.float32),
        "beta3": jnp.zeros((hidden_dim * 4,), jnp.float32),
    }


def discriminator_forward(params, x_nchw):
    n = x_nchw.shape[0]
    x = jnp.transpose(x_nchw, (0, 2, 3, 1)).astype(jnp.bfloat16)   # NHWC, bf16 operands

    # conv_1: Conv(4,2,1) + LeakyReLU(0.2), fused in the matmul epilogue.
    w1f = flatten_weight(params["w1"])
    c1 = params["w1"].shape[0]
    p, oh, ow = extract_patches(x, 4, 4, 2, 1)
    y = conv_act(p, w1f, act="leaky", out_dtype=jnp.bfloat16)
    x = y[: n * oh * ow, :c1].reshape(n, oh, ow, c1)

    # conv_2: Conv(4,2,1) -> BatchNorm (batch stats, fused partials) -> LeakyReLU(0.2)
    w2f = flatten_weight(params["w2"])
    c2 = params["w2"].shape[0]
    g2, b2 = pad_affine(params["gamma2"], params["beta2"], w2f.shape[1])
    p, oh, ow = extract_patches(x, 4, 4, 2, 1)
    y = conv_bn_leaky(p, w2f, g2, b2, out_dtype=jnp.bfloat16)
    x = y[: n * oh * ow, :c2].reshape(n, oh, ow, c2)

    # conv_3: Conv(4,2,1) -> BatchNorm -> LeakyReLU(0.2)
    w3f = flatten_weight(params["w3"])
    c3 = params["w3"].shape[0]
    g3, b3 = pad_affine(params["gamma3"], params["beta3"], w3f.shape[1])
    p, oh, ow = extract_patches(x, 4, 4, 2, 1)
    y = conv_bn_leaky(p, w3f, g3, b3, out_dtype=jnp.bfloat16)
    x = y[: n * oh * ow, :c3].reshape(n, oh, ow, c3)

    # conv_4: Conv(4,1,0) + Sigmoid (Cout=1 padded to 128 lanes, sliced after).
    w4f = flatten_weight(params["w4"])
    p, oh, ow = extract_patches(x, 4, 4, 1, 0)
    y = conv_act(p, w4f, act="sigmoid", out_dtype=jnp.float32)
    x = y[: n * oh * ow, :1].reshape(n, oh, ow, 1)

    return jnp.transpose(x, (0, 3, 1, 2))   # NCHW: (N, 1, 1, 1)


# --------------------------------- main ------------------------------------ #

if __name__ == "__main__":
    # Small DCGAN-consistent shapes: 32x32 input -> 16 -> 8 -> 4 -> 1.
    batch, in_dim, hidden_dim, spatial = 2, 3, 8, 32

    key = jax.random.PRNGKey(0)
    kx, kp = jax.random.split(key)
    x = jax.random.normal(kx, (batch, in_dim, spatial, spatial), jnp.float32)
    params = init_params(kp, in_dim, hidden_dim)

    out = jax.jit(discriminator_forward)(params, x)
    out = jax.block_until_ready(out)

    assert out.shape == (batch, 1, 1, 1), out.shape
    assert bool(jnp.all(jnp.isfinite(out)))
    # sigmoid range (tiny tolerance for the approx-reciprocal EUP path)
    assert bool(jnp.all((out >= 0.0) & (out <= 1.0 + 1e-3)))

    print("KERNEL_OK")
</pallas_src>

<mosaic_0001>
module attributes {stable_mosaic.version = 11 : i64} {
  func.func @_conv_act_kernel(%arg0: i32, %arg1: memref<512x48xbf16, #tpu.memory_space<vmem>>, %arg2: memref<48x128xbf16, #tpu.memory_space<vmem>>, %arg3: memref<512x128xbf16, #tpu.memory_space<vmem>>) attributes {dimension_semantics = [#tpu.dimension_semantics<parallel>], iteration_bounds = array<i64: 1>, scalar_prefetch = 0 : i64, scratch_operands = 0 : i64, tpu.core_type = #tpu.core_type<tc>, window_params = [{transform_indices = @transform_0, window_bounds = array<i64: 512, 48>}, {pipeline_mode = #tpu.pipeline_mode<synchronous>, transform_indices = @transform_1, window_bounds = array<i64: 48, 128>}, {transform_indices = @transform_2, window_bounds = array<i64: 512, 128>}]} {
    %c0 = arith.constant 0 : index
    %c0_0 = arith.constant 0 : index
    %0 = vector.load %arg1[%c0, %c0_0] : memref<512x48xbf16, #tpu.memory_space<vmem>>, vector<512x48xbf16>
    %c0_1 = arith.constant 0 : index
    %c0_2 = arith.constant 0 : index
    %1 = vector.load %arg2[%c0_1, %c0_2] : memref<48x128xbf16, #tpu.memory_space<vmem>>, vector<48x128xbf16>
    %cst = arith.constant dense<0.000000e+00> : vector<512x128xf32>
    %2 = tpu.matmul %0, %1, %cst {dimension_numbers = #tpu.dot_dimension_numbers<[1], [0], [0], [1], [0, 0, 1, 1], [], []>} : vector<512x48xbf16>, vector<48x128xbf16>, vector<512x128xf32> -> vector<512x128xf32>
    %cst_3 = arith.constant 0.000000e+00 : f32
    %3 = vector.broadcast %cst_3 : f32 to vector<512x128xf32>
    %4 = arith.cmpf ogt, %2, %3 : vector<512x128xf32>
    %cst_4 = arith.constant 2.000000e-01 : f32
    %5 = vector.broadcast %cst_4 : f32 to vector<512x128xf32>
    %6 = arith.mulf %5, %2 : vector<512x128xf32>
    %7 = arith.select %4, %2, %6 : vector<512x128xi1>, vector<512x128xf32>
    %8 = arith.truncf %7 : vector<512x128xf32> to vector<512x128xbf16>
    %c0_5 = arith.constant 0 : index
    %c0_6 = arith.constant 0 : index
    %9 = vector.load %arg3[%c0_5, %c0_6] : memref<512x128xbf16, #tpu.memory_space<vmem>>, vector<512x128xbf16>
    tpu.vector_store %arg3[%c0_5, %c0_6], %8 {strides = array<i32>} : memref<512x128xbf16, #tpu.memory_space<vmem>>, vector<512x128xbf16>,
    return
  }
  func.func @transform_0(%arg0: i32) -> (i32, i32) {
    %c0_i32 = arith.constant 0 : i32
    %c0_i32_0 = arith.constant 0 : i32
    return %arg0, %c0_i32 : i32, i32
  }
  func.func @transform_1(%arg0: i32) -> (i32, i32) {
    %c0_i32 = arith.constant 0 : i32
    %c0_i32_0 = arith.constant 0 : i32
    %c0_i32_1 = arith.constant 0 : i32
    return %c0_i32, %c0_i32_0 : i32, i32
  }
  func.func @transform_2(%arg0: i32) -> (i32, i32) {
    %c0_i32 = arith.constant 0 : i32
    %c0_i32_0 = arith.constant 0 : i32
    return %arg0, %c0_i32 : i32, i32
  }
}

module attributes {stable_mosaic.version = 11 : i64} {
  func.func @_conv_stats_kernel(%arg0: i32, %arg1: memref<128x128xbf16, #tpu.memory_space<vmem>>, %arg2: memref<128x128xbf16, #tpu.memory_space<vmem>>, %arg3: memref<128x128xf32, #tpu.memory_space<vmem>>, %arg4: memref<1x2x128xf32, #tpu.memory_space<vmem>>) attributes {dimension_semantics = [#tpu.dimension_semantics<parallel>], iteration_bounds = array<i64: 1>, scalar_prefetch = 0 : i64, scratch_operands = 0 : i64, tpu.core_type = #tpu.core_type<tc>, window_params = [{transform_indices = @transform_0, window_bounds = array<i64: 128, 128>}, {pipeline_mode = #tpu.pipeline_mode<synchronous>, transform_indices = @transform_1, window_bounds = array<i64: 128, 128>}, {transform_indices = @transform_2, window_bounds = array<i64: 128, 128>}, {transform_indices = @transform_3, window_bounds = array<i64: 1, 2, 128>}]} {
    %c0 = arith.constant 0 : index
    %c0_0 = arith.constant 0 : index
    %0 = vector.load %arg1[%c0, %c0_0] : memref<128x128xbf16, #tpu.memory_space<vmem>>, vector<128x128xbf16>
    %c0_1 = arith.constant 0 : index
    %c0_2 = arith.constant 0 : index
    %1 = vector.load %arg2[%c0_1, %c0_2] : memref<128x128xbf16, #tpu.memory_space<vmem>>, vector<128x128xbf16>
    %cst = arith.constant dense<0.000000e+00> : vector<128x128xf32>
    %2 = tpu.matmul %0, %1, %cst {dimension_numbers = #tpu.dot_dimension_numbers<[1], [0], [0], [1], [0, 0, 1, 1], [], []>} : vector<128x128xbf16>, vector<128x128xbf16>, vector<128x128xf32> -> vector<128x128xf32>
    %c0_3 = arith.constant 0 : index
    %c0_4 = arith.constant 0 : index
    %3 = vector.load %arg3[%c0_3, %c0_4] : memref<128x128xf32, #tpu.memory_space<vmem>>, vector<128x128xf32>
    tpu.vector_store %arg3[%c0_3, %c0_4], %2 {strides = array<i32>} : memref<128x128xf32, #tpu.memory_space<vmem>>, vector<128x128xf32>,
    %cst_5 = arith.constant dense<0.000000e+00> : vector<128xf32>
    %4 = vector.multi_reduction <add>, %2, %cst_5 [0] : vector<128x128xf32> to vector<128xf32>
    %5 = vector.shape_cast %4 : vector<128xf32> to vector<1x128xf32>
    %6 = arith.mulf %2, %2 : vector<128x128xf32>
    %cst_6 = arith.constant dense<0.000000e+00> : vector<128xf32>
    %7 = vector.multi_reduction <add>, %6, %cst_6 [0] : vector<128x128xf32> to vector<128xf32>
    %8 = vector.shape_cast %7 : vector<128xf32> to vector<1x128xf32>
    %9 = tpu.concatenate %5, %8 in 0 : vector<1x128xf32>, vector<1x128xf32> -> vector<2x128xf32>
    %10 = vector.shape_cast %9 : vector<2x128xf32> to vector<1x2x128xf32>
    %c0_7 = arith.constant 0 : index
    %c0_8 = arith.constant 0 : index
    %c0_9 = arith.constant 0 : index
    %11 = vector.load %arg4[%c0_7, %c0_8, %c0_9] : memref<1x2x128xf32, #tpu.memory_space<vmem>>, vector<1x2x128xf32>
    tpu.vector_store %arg4[%c0_7, %c0_8, %c0_9], %10 {strides = array<i32>} : memref<1x2x128xf32, #tpu.memory_space<vmem>>, vector<1x2x128xf32>,
    return
  }
  func.func @transform_0(%arg0: i32) -> (i32, i32) {
    %c0_i32 = arith.constant 0 : i32
    %c0_i32_0 = arith.constant 0 : i32
    return %arg0, %c0_i32 : i32, i32
  }
  func.func @transform_1(%arg0: i32) -> (i32, i32) {
    %c0_i32 = arith.constant 0 : i32
    %c0_i32_0 = arith.constant 0 : i32
    %c0_i32_1 = arith.constant 0 : i32
    return %c0_i32, %c0_i32_0 : i32, i32
  }
  func.func @transform_2(%arg0: i32) -> (i32, i32) {
    %c0_i32 = arith.constant 0 : i32
    %c0_i32_0 = arith.constant 0 : i32
    return %arg0, %c0_i32 : i32, i32
  }
  func.func @transform_3(%arg0: i32) -> (i32, i32, i32) {
    %c0_i32 = arith.constant 0 : i32
    %c0_i32_0 = arith.constant 0 : i32
    %c0_i32_1 = arith.constant 0 : i32
    return %arg0, %c0_i32, %c0_i32_0 : i32, i32, i32
  }
}

module attributes {stable_mosaic.version = 11 : i64} {
  func.func @_bn_apply_leaky_kernel(%arg0: i32, %arg1: memref<128x128xf32, #tpu.memory_space<vmem>>, %arg2: memref<1x128xf32, #tpu.memory_space<vmem>>, %arg3: memref<1x128xf32, #tpu.memory_space<vmem>>, %arg4: memref<128x128xbf16, #tpu.memory_space<vmem>>) attributes {dimension_semantics = [#tpu.dimension_semantics<parallel>], iteration_bounds = array<i64: 1>, scalar_prefetch = 0 : i64, scratch_operands = 0 : i64, tpu.core_type = #tpu.core_type<tc>, window_params = [{transform_indices = @transform_0, window_bounds = array<i64: 128, 128>}, {pipeline_mode = #tpu.pipeline_mode<synchronous>, transform_indices = @transform_1, window_bounds = array<i64: 1, 128>}, {pipeline_mode = #tpu.pipeline_mode<synchronous>, transform_indices = @transform_2, window_bounds = array<i64: 1, 128>}, {transform_indices = @transform_3, window_bounds = array<i64: 128, 128>}]} {
    %c0 = arith.constant 0 : index
    %c0_0 = arith.constant 0 : index
    %0 = vector.load %arg1[%c0, %c0_0] : memref<128x128xf32, #tpu.memory_space<vmem>>, vector<128x128xf32>
    %c0_1 = arith.constant 0 : index
    %c0_2 = arith.constant 0 : index
    %1 = vector.load %arg2[%c0_1, %c0_2] : memref<1x128xf32, #tpu.memory_space<vmem>>, vector<1x128xf32>
    %2 = vector.broadcast %1 : vector<1x128xf32> to vector<128x128xf32>
    %3 = arith.mulf %0, %2 : vector<128x128xf32>
    %c0_3 = arith.constant 0 : index
    %c0_4 = arith.constant 0 : index
    %4 = vector.load %arg3[%c0_3, %c0_4] : memref<1x128xf32, #tpu.memory_space<vmem>>, vector<1x128xf32>
    %5 = vector.broadcast %4 : vector<1x128xf32> to vector<128x128xf32>
    %6 = arith.addf %3, %5 : vector<128x128xf32>
    %cst = arith.constant 0.000000e+00 : f32
    %7 = vector.broadcast %cst : f32 to vector<128x128xf32>
    %8 = arith.cmpf ogt, %6, %7 : vector<128x128xf32>
    %cst_5 = arith.constant 2.000000e-01 : f32
    %9 = vector.broadcast %cst_5 : f32 to vector<128x128xf32>
    %10 = arith.mulf %9, %6 : vector<128x128xf32>
    %11 = arith.select %8, %6, %10 : vector<128x128xi1>, vector<128x128xf32>
    %12 = arith.truncf %11 : vector<128x128xf32> to vector<128x128xbf16>
    %c0_6 = arith.constant 0 : index
    %c0_7 = arith.constant 0 : index
    %13 = vector.load %arg4[%c0_6, %c0_7] : memref<128x128xbf16, #tpu.memory_space<vmem>>, vector<128x128xbf16>
    tpu.vector_store %arg4[%c0_6, %c0_7], %12 {strides = array<i32>} : memref<128x128xbf16, #tpu.memory_space<vmem>>, vector<128x128xbf16>,
    return
  }
  func.func @transform_0(%arg0: i32) -> (i32, i32) {
    %c0_i32 = arith.constant 0 : i32
    %c0_i32_0 = arith.constant 0 : i32
    return %arg0, %c0_i32 : i32, i32
  }
  func.func @transform_1(%arg0: i32) -> (i32, i32) {
    %c0_i32 = arith.constant 0 : i32
    %c0_i32_0 = arith.constant 0 : i32
    %c0_i32_1 = arith.constant 0 : i32
    return %c0_i32, %c0_i32_0 : i32, i32
  }
  func.func @transform_2(%arg0: i32) -> (i32, i32) {
    %c0_i32 = arith.constant 0 : i32
    %c0_i32_0 = arith.constant 0 : i32
    %c0_i32_1 = arith.constant 0 : i32
    return %c0_i32, %c0_i32_0 : i32, i32
  }
  func.func @transform_3(%arg0: i32) -> (i32, i32) {
    %c0_i32 = arith.constant 0 : i32
    %c0_i32_0 = arith.constant 0 : i32
    return %arg0, %c0_i32 : i32, i32
  }
}

module attributes {stable_mosaic.version = 11 : i64} {
  func.func @_conv_stats_kernel(%arg0: i32, %arg1: memref<32x256xbf16, #tpu.memory_space<vmem>>, %arg2: memref<256x128xbf16, #tpu.memory_space<vmem>>, %arg3: memref<32x128xf32, #tpu.memory_space<vmem>>, %arg4: memref<1x2x128xf32, #tpu.memory_space<vmem>>) attributes {dimension_semantics = [#tpu.dimension_semantics<parallel>], iteration_bounds = array<i64: 1>, scalar_prefetch = 0 : i64, scratch_operands = 0 : i64, tpu.core_type = #tpu.core_type<tc>, window_params = [{transform_indices = @transform_0, window_bounds = array<i64: 32, 256>}, {pipeline_mode = #tpu.pipeline_mode<synchronous>, transform_indices = @transform_1, window_bounds = array<i64: 256, 128>}, {transform_indices = @transform_2, window_bounds = array<i64: 32, 128>}, {transform_indices = @transform_3, window_bounds = array<i64: 1, 2, 128>}]} {
    %c0 = arith.constant 0 : index
    %c0_0 = arith.constant 0 : index
    %0 = vector.load %arg1[%c0, %c0_0] : memref<32x256xbf16, #tpu.memory_space<vmem>>, vector<32x256xbf16>
    %c0_1 = arith.constant 0 : index
    %c0_2 = arith.constant 0 : index
    %1 = vector.load %arg2[%c0_1, %c0_2] : memref<256x128xbf16, #tpu.memory_space<vmem>>, vector<256x128xbf16>
    %cst = arith.constant dense<0.000000e+00> : vector<32x128xf32>
    %2 = tpu.matmul %0, %1, %cst {dimension_numbers = #tpu.dot_dimension_numbers<[1], [0], [0], [1], [0, 0, 1, 1], [], []>} : vector<32x256xbf16>, vector<256x128xbf16>, vector<32x128xf32> -> vector<32x128xf32>
    %c0_3 = arith.constant 0 : index
    %c0_4 = arith.constant 0 : index
    %3 = vector.load %arg3[%c0_3, %c0_4] : memref<32x128xf32, #tpu.memory_space<vmem>>, vector<32x128xf32>
    tpu.vector_store %arg3[%c0_3, %c0_4], %2 {strides = array<i32>} : memref<32x128xf32, #tpu.memory_space<vmem>>, vector<32x128xf32>,
    %cst_5 = arith.constant dense<0.000000e+00> : vector<128xf32>
    %4 = vector.multi_reduction <add>, %2, %cst_5 [0] : vector<32x128xf32> to vector<128xf32>
    %5 = vector.shape_cast %4 : vector<128xf32> to vector<1x128xf32>
    %6 = arith.mulf %2, %2 : vector<32x128xf32>
    %cst_6 = arith.constant dense<0.000000e+00> : vector<128xf32>
    %7 = vector.multi_reduction <add>, %6, %cst_6 [0] : vector<32x128xf32> to vector<128xf32>
    %8 = vector.shape_cast %7 : vector<128xf32> to vector<1x128xf32>
    %9 = tpu.concatenate %5, %8 in 0 : vector<1x128xf32>, vector<1x128xf32> -> vector<2x128xf32>
    %10 = vector.shape_cast %9 : vector<2x128xf32> to vector<1x2x128xf32>
    %c0_7 = arith.constant 0 : index
    %c0_8 = arith.constant 0 : index
    %c0_9 = arith.constant 0 : index
    %11 = vector.load %arg4[%c0_7, %c0_8, %c0_9] : memref<1x2x128xf32, #tpu.memory_space<vmem>>, vector<1x2x128xf32>
    tpu.vector_store %arg4[%c0_7, %c0_8, %c0_9], %10 {strides = array<i32>} : memref<1x2x128xf32, #tpu.memory_space<vmem>>, vector<1x2x128xf32>,
    return
  }
  func.func @transform_0(%arg0: i32) -> (i32, i32) {
    %c0_i32 = arith.constant 0 : i32
    %c0_i32_0 = arith.constant 0 : i32
    return %arg0, %c0_i32 : i32, i32
  }
  func.func @transform_1(%arg0: i32) -> (i32, i32) {
    %c0_i32 = arith.constant 0 : i32
    %c0_i32_0 = arith.constant 0 : i32
    %c0_i32_1 = arith.constant 0 : i32
    return %c0_i32, %c0_i32_0 : i32, i32
  }
  func.func @transform_2(%arg0: i32) -> (i32, i32) {
    %c0_i32 = arith.constant 0 : i32
    %c0_i32_0 = arith.constant 0 : i32
    return %arg0, %c0_i32 : i32, i32
  }
  func.func @transform_3(%arg0: i32) -> (i32, i32, i32) {
    %c0_i32 = arith.constant 0 : i32
    %c0_i32_0 = arith.constant 0 : i32
    %c0_i32_1 = arith.constant 0 : i32
    return %arg0, %c0_i32, %c0_i32_0 : i32, i32, i32
  }
}

module attributes {stable_mosaic.version = 11 : i64} {
  func.func @_bn_apply_leaky_kernel(%arg0: i32, %arg1: memref<32x128xf32, #tpu.memory_space<vmem>>, %arg2: memref<1x128xf32, #tpu.memory_space<vmem>>, %arg3: memref<1x128xf32, #tpu.memory_space<vmem>>, %arg4: memref<32x128xbf16, #tpu.memory_space<vmem>>) attributes {dimension_semantics = [#tpu.dimension_semantics<parallel>], iteration_bounds = array<i64: 1>, scalar_prefetch = 0 : i64, scratch_operands = 0 : i64, tpu.core_type = #tpu.core_type<tc>, window_params = [{transform_indices = @transform_0, window_bounds = array<i64: 32, 128>}, {pipeline_mode = #tpu.pipeline_mode<synchronous>, transform_indices = @transform_1, window_bounds = array<i64: 1, 128>}, {pipeline_mode = #tpu.pipeline_mode<synchronous>, transform_indices = @transform_2, window_bounds = array<i64: 1, 128>}, {transform_indices = @transform_3, window_bounds = array<i64: 32, 128>}]} {
    %c0 = arith.constant 0 : index
    %c0_0 = arith.constant 0 : index
    %0 = vector.load %arg1[%c0, %c0_0] : memref<32x128xf32, #tpu.memory_space<vmem>>, vector<32x128xf32>
    %c0_1 = arith.constant 0 : index
    %c0_2 = arith.constant 0 : index
    %1 = vector.load %arg2[%c0_1, %c0_2] : memref<1x128xf32, #tpu.memory_space<vmem>>, vector<1x128xf32>
    %2 = vector.broadcast %1 : vector<1x128xf32> to vector<32x128xf32>
    %3 = arith.mulf %0, %2 : vector<32x128xf32>
    %c0_3 = arith.constant 0 : index
    %c0_4 = arith.constant 0 : index
    %4 = vector.load %arg3[%c0_3, %c0_4] : memref<1x128xf32, #tpu.memory_space<vmem>>, vector<1x128xf32>
    %5 = vector.broadcast %4 : vector<1x128xf32> to vector<32x128xf32>
    %6 = arith.addf %3, %5 : vector<32x128xf32>
    %cst = arith.constant 0.000000e+00 : f32
    %7 = vector.broadcast %cst : f32 to vector<32x128xf32>
    %8 = arith.cmpf ogt, %6, %7 : vector<32x128xf32>
    %cst_5 = arith.constant 2.000000e-01 : f32
    %9 = vector.broadcast %cst_5 : f32 to vector<32x128xf32>
    %10 = arith.mulf %9, %6 : vector<32x128xf32>
    %11 = arith.select %8, %6, %10 : vector<32x128xi1>, vector<32x128xf32>
    %12 = arith.truncf %11 : vector<32x128xf32> to vector<32x128xbf16>
    %c0_6 = arith.constant 0 : index
    %c0_7 = arith.constant 0 : index
    %13 = vector.load %arg4[%c0_6, %c0_7] : memref<32x128xbf16, #tpu.memory_space<vmem>>, vector<32x128xbf16>
    tpu.vector_store %arg4[%c0_6, %c0_7], %12 {strides = array<i32>} : memref<32x128xbf16, #tpu.memory_space<vmem>>, vector<32x128xbf16>,
    return
  }
  func.func @transform_0(%arg0: i32) -> (i32, i32) {
    %c0_i32 = arith.constant 0 : i32
    %c0_i32_0 = arith.constant 0 : i32
    return %arg0, %c0_i32 : i32, i32
  }
  func.func @transform_1(%arg0: i32) -> (i32, i32) {
    %c0_i32 = arith.constant 0 : i32
    %c0_i32_0 = arith.constant 0 : i32
    %c0_i32_1 = arith.constant 0 : i32
    return %c0_i32, %c0_i32_0 : i32, i32
  }
  func.func @transform_2(%arg0: i32) -> (i32, i32) {
    %c0_i32 = arith.constant 0 : i32
    %c0_i32_0 = arith.constant 0 : i32
    %c0_i32_1 = arith.constant 0 : i32
    return %c0_i32, %c0_i32_0 : i32, i32
  }
  func.func @transform_3(%arg0: i32) -> (i32, i32) {
    %c0_i32 = arith.constant 0 : i32
    %c0_i32_0 = arith.constant 0 : i32
    return %arg0, %c0_i32 : i32, i32
  }
}

module attributes {stable_mosaic.version = 11 : i64} {
  func.func @_conv_act_kernel(%arg0: i32, %arg1: memref<2x512xbf16, #tpu.memory_space<vmem>>, %arg2: memref<512x128xbf16, #tpu.memory_space<vmem>>, %arg3: memref<2x128xf32, #tpu.memory_space<vmem>>) attributes {dimension_semantics = [#tpu.dimension_semantics<parallel>], iteration_bounds = array<i64: 1>, scalar_prefetch = 0 : i64, scratch_operands = 0 : i64, tpu.core_type = #tpu.core_type<tc>, window_params = [{transform_indices = @transform_0, window_bounds = array<i64: 2, 512>}, {pipeline_mode = #tpu.pipeline_mode<synchronous>, transform_indices = @transform_1, window_bounds = array<i64: 512, 128>}, {transform_indices = @transform_2, window_bounds = array<i64: 2, 128>}]} {
    %c0 = arith.constant 0 : index
    %c0_0 = arith.constant 0 : index
    %0 = vector.load %arg1[%c0, %c0_0] : memref<2x512xbf16, #tpu.memory_space<vmem>>, vector<2x512xbf16>
    %c0_1 = arith.constant 0 : index
    %c0_2 = arith.constant 0 : index
    %1 = vector.load %arg2[%c0_1, %c0_2] : memref<512x128xbf16, #tpu.memory_space<vmem>>, vector<512x128xbf16>
    %cst = arith.constant dense<0.000000e+00> : vector<2x128xf32>
    %2 = tpu.matmul %0, %1, %cst {dimension_numbers = #tpu.dot_dimension_numbers<[1], [0], [0], [1], [0, 0, 1, 1], [], []>} : vector<2x512xbf16>, vector<512x128xbf16>, vector<2x128xf32> -> vector<2x128xf32>
    %cst_3 = arith.constant 0.000000e+00 : f32
    %3 = vector.broadcast %cst_3 : f32 to vector<2x128xf32>
    %4 = arith.subf %3, %2 : vector<2x128xf32>
    %5 = math.exp %4 : vector<2x128xf32>
    %cst_4 = arith.constant 1.000000e+00 : f32
    %6 = vector.broadcast %cst_4 : f32 to vector<2x128xf32>
    %7 = arith.addf %6, %5 : vector<2x128xf32>
    %8 = tpu.reciprocal %7 {approx = true} : vector<2x128xf32> -> vector<2x128xf32>
    %c0_5 = arith.constant 0 : index
    %c0_6 = arith.constant 0 : index
    %9 = vector.load %arg3[%c0_5, %c0_6] : memref<2x128xf32, #tpu.memory_space<vmem>>, vector<2x128xf32>
    tpu.vector_store %arg3[%c0_5, %c0_6], %8 {strides = array<i32>} : memref<2x128xf32, #tpu.memory_space<vmem>>, vector<2x128xf32>,
    return
  }
  func.func @transform_0(%arg0: i32) -> (i32, i32) {
    %c0_i32 = arith.constant 0 : i32
    %c0_i32_0 = arith.constant 0 : i32
    return %arg0, %c0_i32 : i32, i32
  }
  func.func @transform_1(%arg0: i32) -> (i32, i32) {
    %c0_i32 = arith.constant 0 : i32
    %c0_i32_0 = arith.constant 0 : i32
    %c0_i32_1 = arith.constant 0 : i32
    return %c0_i32, %c0_i32_0 : i32, i32
  }
  func.func @transform_2(%arg0: i32) -> (i32, i32) {
    %c0_i32 = arith.constant 0 : i32
    %c0_i32_0 = arith.constant 0 : i32
    return %arg0, %c0_i32 : i32, i32
  }
}

</mosaic_0001>

<llo_original>
// kernel: discriminator_forward.7
$region0: #{discriminator_forward.7}
  #allocation0 [shape = 'u32[]', space=smem, size = 0x4, offset = 0x4, fixed_abs, tag = 'smem constant byte address 0x4 - core index']
  #allocation1 [shape = 'u32[144,128]{1,0:T(1,128)}', space=vmem, size = 0x12000, scoped, tag = 'internal scratch']
  %s0 = inlined_call_operand.vmem [shape: bf16[128,128], index: 0, kind: input, shape index: {}]
  %s1 = inlined_call_operand.vmem [shape: bf16[128,128], index: 1, kind: input, shape index: {}]
  %s2 = inlined_call_operand.vmem [shape: f32[128,128], index: 2, kind: output, shape index: {0}]
  %s3 = inlined_call_operand.vmem [shape: f32[1,2,128], index: 3, kind: output, shape index: {1}]
  %4 = xla_tuple %s2, %s3
  %s5 = sld [smem:[#allocation0]]
  $region26: #{discriminator_forward.7} parent=0
    _
  %s7 = ssub.s32 1, %s5
  %s8 = scalar_select 0, %s7, %s5
  // Predicated region
  $region2: #{discriminator_forward.7} parent=0 // pred_check
    _
  $region3: #{discriminator_forward.7} parent=0 // pred_check_branch
    %10 = sbr.rel (0) target = $region5
  $region4: #{discriminator_forward.7} parent=0 // pred_region
    _
  $region5: #{discriminator_forward.7} parent=0 // pred_fallthru
    _
  // Predicated region
  $region6: #{discriminator_forward.7} parent=0 // pred_check
    _
  $region7: #{discriminator_forward.7} parent=0 // pred_check_branch
    %12 = sbr.rel (0) target = $region9
  $region8: #{discriminator_forward.7} parent=0 // pred_region
    _
  $region9: #{discriminator_forward.7} parent=0 // pred_fallthru
    _
  %v14 = vld [vmem:[%s0] sm:$0xf]
  %v15 = vld [vmem:[%s0 + $0x4] sm:$0xf]
  %v16 = vld [vmem:[%s0 + $0x8] sm:$0xf]
  %v17 = vld [vmem:[%s0 + $0xc] sm:$0xf]
  %v18 = vld [vmem:[%s0 + $0x10] sm:$0xf]
  %v19 = vld [vmem:[%s0 + $0x14] sm:$0xf]
  %v20 = vld [vmem:[%s0 + $0x18] sm:$0xf]
  %v21 = vld [vmem:[%s0 + $0x1c] sm:$0xf]
  %v22 = vld [vmem:[%s0 + $0x20] sm:$0xf]
  %v23 = vld [vmem:[%s0 + $0x24] sm:$0xf]
  %v24 = vld [vmem:[%s0 + $0x28] sm:$0xf]
  %v25 = vld [vmem:[%s0 + $0x2c] sm:$0xf]
  %v26 = vld [vmem:[%s0 + $0x30] sm:$0xf]
  %v27 = vld [vmem:[%s0 + $0x34] sm:$0xf]
  %v28 = vld [vmem:[%s0 + $0x38] sm:$0xf]
  %v29 = vld [vmem:[%s0 + $0x3c] sm:$0xf]
  %v30 = vld [vmem:[%s1] sm:$0xf]
  %v31 = vld [vmem:[%s1 + $0x4] sm:$0xf]
  %v32 = vld [vmem:[%s1 + $0x8] sm:$0xf]
  %v33 = vld [vmem:[%s1 + $0xc] sm:$0xf]
  %v34 = vld [vmem:[%s1 + $0x10] sm:$0xf]
  %v35 = vld [vmem:[%s1 + $0x14] sm:$0xf]
  %v36 = vld [vmem:[%s1 + $0x18] sm:$0xf]
  %v37 = vld [vmem:[%s1 + $0x1c] sm:$0xf]
  %v38 = vld [vmem:[%s1 + $0x20] sm:$0xf]
  %v39 = vld [vmem:[%s1 + $0x24] sm:$0xf]
  %v40 = vld [vmem:[%s1 + $0x28] sm:$0xf]
  %v41 = vld [vmem:[%s1 + $0x2c] sm:$0xf]
  %v42 = vld [vmem:[%s1 + $0x30] sm:$0xf]
  %v43 = vld [vmem:[%s1 + $0x34] sm:$0xf]
  %v44 = vld [vmem:[%s1 + $0x38] sm:$0xf]
  %v45 = vld [vmem:[%s1 + $0x3c] sm:$0xf]
  %v62 = vunpack.c.l.b16 %v14
  %v63 = vunpack.c.l.b16 %v15
  %v64 = vunpack.c.l.b16 %v16
  %v65 = vunpack.c.l.b16 %v17
  %v66 = vunpack.c.l.b16 %v18
  %v67 = vunpack.c.l.b16 %v19
  %v68 = vunpack.c.l.b16 %v20
  %v69 = vunpack.c.l.b16 %v21
  %v70 = vunpack.c.l.b16 %v22
  %v71 = vunpack.c.l.b16 %v23
  %v72 = vunpack.c.l.b16 %v24
  %v73 = vunpack.c.l.b16 %v25
  %v74 = vunpack.c.l.b16 %v26
  %v75 = vunpack.c.l.b16 %v27
  %v76 = vunpack.c.l.b16 %v28
  %v77 = vunpack.c.l.b16 %v29
  %v78 = vpack.c.b16 %v63, %v62
  %v79 = vpack.c.b16 %v65, %v64
  %v80 = vpack.c.b16 %v67, %v66
  %v81 = vpack.c.b16 %v69, %v68
  %v82 = vpack.c.b16 %v71, %v70
  %v83 = vpack.c.b16 %v73, %v72
  %v84 = vpack.c.b16 %v75, %v74
  %v85 = vpack.c.b16 %v77, %v76
  %v110 = vunpack.c.l.b16 %v30
  %v111 = vunpack.c.l.b16 %v31
  %v112 = vunpack.c.l.b16 %v32
  %v113 = vunpack.c.l.b16 %v33
  %v114 = vunpack.c.l.b16 %v34
  %v115 = vunpack.c.l.b16 %v35
  %v116 = vunpack.c.l.b16 %v36
  %v117 = vunpack.c.l.b16 %v37
  %v118 = vunpack.c.l.b16 %v38
  %v119 = vunpack.c.l.b16 %v39
  %v120 = vunpack.c.l.b16 %v40
  %v121 = vunpack.c.l.b16 %v41
  %v122 = vunpack.c.l.b16 %v42
  %v123 = vunpack.c.l.b16 %v43
  %v124 = vunpack.c.l.b16 %v44
  %v125 = vunpack.c.l.b16 %v45
  %v126 = vpack.c.b16 %v111, %v110
  %v127 = vpack.c.b16 %v113, %v112
  %v128 = vpack.c.b16 %v115, %v114
  %v129 = vpack.c.b16 %v117, %v116
  %v130 = vpack.c.b16 %v119, %v118
  %v131 = vpack.c.b16 %v121, %v120
  %v132 = vpack.c.b16 %v123, %v122
  %v133 = vpack.c.b16 %v125, %v124
  %142 = vmatprep.subr.bf16.mxu0 0
  %143 = vmatpush1.bf16.msra.mxu0 %v133
  %144 = vmatprep.subr.bf16.mxu0 0
  %145 = vmatpush1.bf16.msra.mxu0 %v132
  %146 = vmatprep.subr.bf16.mxu0 0
  %147 = vmatpush1.bf16.msra.mxu0 %v131
  %148 = vmatprep.subr.bf16.mxu0 0
  %149 = vmatpush1.bf16.msra.mxu0 %v130
  %150 = vmatprep.subr.bf16.mxu0 0
  %151 = vmatpush1.bf16.msra.mxu0 %v129
  %152 = vmatprep.subr.bf16.mxu0 0
  %153 = vmatpush1.bf16.msra.mxu0 %v128
  %154 = vmatprep.subr.bf16.mxu0 0
  %155 = vmatpush1.bf16.msra.mxu0 %v127
  %156 = vmatprep.subr.bf16.mxu0 0
  %157 = vmatpush1.bf16.msra.mxu0 %v126
  %158 = vmatprep.subr.bf16.mxu0 0
  %159 = vmatpush2.bf16.msra.mxu0 0
  %160 = vmatprep.subr.bf16.mxu0 0
  %161 = vmatpush2.bf16.msra.mxu0 0
  %162 = vmatprep.subr.bf16.mxu0 0
  %163 = vmatpush2.bf16.msra.mxu0 0
  %164 = vmatprep.subr.bf16.mxu0 0
  %165 = vmatpush2.bf16.msra.mxu0 0
  %166 = vmatprep.subr.bf16.mxu0 0
  %167 = vmatpush2.bf16.msra.mxu0 0
  %168 = vmatprep.subr.bf16.mxu0 0
  %169 = vmatpush2.bf16.msra.mxu0 0
  %170 = vmatprep.subr.bf16.mxu0 0
  %171 = vmatpush2.bf16.msra.mxu0 0
  %172 = vmatprep.subr.bf16.mxu0 0
  %173 = vmatpush2.bf16.msra.mxu0 0
  %174 = vmatprep.mubr.bf16.mxu0 0
  %175 = vmatmul.mubr.bf16.gmra.mxu0 %v78
  %v176 = vpop.f32.mrf.mxu0
  %v177 = vadd.f32 0.0, %v176
  %v178 = vpop.f32.mrf.mxu0
  %v179 = vpop.f32.mrf.mxu0
  %v180 = vadd.f32 0.0, %v179
  %v181 = vpop.f32.mrf.mxu0
  %182 = vmatprep.mubr.bf16.mxu0 0
  %183 = vmatmul.mubr.bf16.gmra.mxu0 %v79
  %v184 = vpop.f32.mrf.mxu0
  %v185 = vadd.f32 0.0, %v184
  %v186 = vpop.f32.mrf.mxu0
  %v187 = vpop.f32.mrf.mxu0
  %v188 = vadd.f32 0.0, %v187
  %v189 = vpop.f32.mrf.mxu0
  %190 = vmatprep.mubr.bf16.mxu0 0
  %191 = vmatmul.mubr.bf16.gmra.mxu0 %v80
  %v192 = vpop.f32.mrf.mxu0
  %v193 = vadd.f32 0.0, %v192
  %v194 = vpop.f32.mrf.mxu0
  %v195 = vpop.f32.mrf.mxu0
  %v196 = vadd.f32 0.0, %v195
  %v197 = vpop.f32.mrf.mxu0
  %198 = vmatprep.mubr.bf16.mxu0 0
  %199 = vmatmul.mubr.bf16.gmra.mxu0 %v81
  %v200 = vpop.f32.mrf.mxu0
  %v201 = vadd.f32 0.0, %v200
  %v202 = vpop.f32.mrf.mxu0
  %v203 = vpop.f32.mrf.mxu0
  %v204 = vadd.f32 0.0, %v203
  %v205 = vpop.f32.mrf.mxu0
  %206 = vmatprep.mubr.bf16.mxu0 0
  %207 = vmatmul.mubr.bf16.gmra.mxu0 %v82
  %v208 = vpop.f32.mrf.mxu0
  %v209 = vadd.f32 0.0, %v208
  %v210 = vpop.f32.mrf.mxu0
  %v211 = vpop.f32.mrf.mxu0
  %v212 = vadd.f32 0.0, %v211
  %v213 = vpop.f32.mrf.mxu0
  %214 = vmatprep.mubr.bf16.mxu0 0
  %215 = vmatmul.mubr.bf16.gmra.mxu0 %v83
  %v216 = vpop.f32.mrf.mxu0
  %v217 = vadd.f32 0.0, %v216
  %v218 = vpop.f32.mrf.mxu0
  %v219 = vpop.f32.mrf.mxu0
  %v220 = vadd.f32 0.0, %v219
  %v221 = vpop.f32.mrf.mxu0
  %222 = vmatprep.mubr.bf16.mxu0 0
  %223 = vmatmul.mubr.bf16.gmra.mxu0 %v84
  %v224 = vpop.f32.mrf.mxu0
  %v225 = vadd.f32 0.0, %v224
  %v226 = vpop.f32.mrf.mxu0
  %v227 = vpop.f32.mrf.mxu0
  %v228 = vadd.f32 0.0, %v227
  %v229 = vpop.f32.mrf.mxu0
  %230 = vmatprep.mubr.bf16.mxu0 0
  %231 = vmatmul.mubr.bf16.gmra.mxu0 %v85
  %v232 = vpop.f32.mrf.mxu0
  %v233 = vadd.f32 0.0, %v232
  %v234 = vpop.f32.mrf.mxu0
  %v235 = vpop.f32.mrf.mxu0
  %v236 = vadd.f32 0.0, %v235
  %v237 = vpop.f32.mrf.mxu0
  %238 = vdwg.mxu0
  %239 = vst [vmem:[%s2] sm:$0xff] %v177
  %240 = vst [vmem:[%s2 + $0x8] sm:$0xff] %v180
  %241 = vst [vmem:[%s2 + $0x10] sm:$0xff] %v185
  %242 = vst [vmem:[%s2 + $0x18] sm:$0xff] %v188
  %243 = vst [vmem:[%s2 + $0x20] sm:$0xff] %v193
  %244 = vst [vmem:[%s2 + $0x28] sm:$0xff] %v196
  %245 = vst [vmem:[%s2 + $0x30] sm:$0xff] %v201
  %246 = vst [vmem:[%s2 + $0x38] sm:$0xff] %v204
  %247 = vst [vmem:[%s2 + $0x40] sm:$0xff] %v209
  %248 = vst [vmem:[%s2 + $0x48] sm:$0xff] %v212
  %249 = vst [vmem:[%s2 + $0x50] sm:$0xff] %v217
  %250 = vst [vmem:[%s2 + $0x58] sm:$0xff] %v220
  %251 = vst [vmem:[%s2 + $0x60] sm:$0xff] %v225
  %252 = vst [vmem:[%s2 + $0x68] sm:$0xff] %v228
  %253 = vst [vmem:[%s2 + $0x70] sm:$0xff] %v233
  %254 = vst [vmem:[%s2 + $0x78] sm:$0xff] %v236
  %v255 = vadd.f32 %v177, %v180
  %v256 = vadd.f32 %v255, %v185
  %v257 = vadd.f32 %v256, %v188
  %v258 = vadd.f32 %v257, %v193
  %v259 = vadd.f32 %v258, %v196
  %v260 = vadd.f32 %v259, %v201
  %v261 = vadd.f32 %v260, %v204
  %v262 = vadd.f32 %v261, %v209
  %v263 = vadd.f32 %v262, %v212
  %v264 = vadd.f32 %v263, %v217
  %v265 = vadd.f32 %v264, %v220
  %v266 = vadd.f32 %v265, %v225
  %v267 = vadd.f32 %v266, %v228
  %v268 = vadd.f32 %v267, %v233
  %v269 = vadd.f32 %v268, %v236
  %v270 = vrot.slane %v269, 4
  %v271 = vadd.f32 %v269, %v270
  %v272 = vrot.slane %v271, 2
  %v273 = vadd.f32 %v271, %v272
  %v274 = vrot.slane %v273, 1
  %v275 = vadd.f32 %v273, %v274
  %v276 = vmul.f32 %v177, %v177
  %v277 = vmul.f32 %v180, %v180
  %v278 = vmul.f32 %v185, %v185
  %v279 = vmul.f32 %v188, %v188
  %v280 = vmul.f32 %v193, %v193
  %v281 = vmul.f32 %v196, %v196
  %v282 = vmul.f32 %v201, %v201
  %v283 = vmul.f32 %v204, %v204
  %v284 = vmul.f32 %v209, %v209
  %v285 = vmul.f32 %v212, %v212
  %v286 = vmul.f32 %v217, %v217
  %v287 = vmul.f32 %v220, %v220
  %v288 = vmul.f32 %v225, %v225
  %v289 = vmul.f32 %v228, %v228
  %v290 = vmul.f32 %v233, %v233
  %v291 = vmul.f32 %v236, %v236
  %v292 = vadd.f32 %v276, %v277
  %v293 = vadd.f32 %v292, %v278
  %v294 = vadd.f32 %v293, %v279
  %v295 = vadd.f32 %v294, %v280
  %v296 = vadd.f32 %v295, %v281
  %v297 = vadd.f32 %v296, %v282
  %v298 = vadd.f32 %v297, %v283
  %v299 = vadd.f32 %v298, %v284
  %v300 = vadd.f32 %v299, %v285
  %v301 = vadd.f32 %v300, %v286
  %v302 = vadd.f32 %v301, %v287
  %v303 = vadd.f32 %v302, %v288
  %v304 = vadd.f32 %v303, %v289
  %v305 = vadd.f32 %v304, %v290
  %v306 = vadd.f32 %v305, %v291
  %v307 = vrot.slane %v306, 4
  %v308 = vadd.f32 %v306, %v307
  %v309 = vrot.slane %v308, 2
  %v310 = vadd.f32 %v308, %v309
  %v311 = vrot.slane %v310, 1
  %v312 = vadd.f32 %v310, %v311
  %vm313 = vcmask 1040384
  %v314 = vsel %vm313, %v275, %v312
  %315 = vst [vmem:[%s3] sm:$0x3] %v314
  // Predicated region
  $region10: #{discriminator_forward.7} parent=0 // pred_check
    _
  $region11: #{discriminator_forward.7} parent=0 // pred_check_branch
    %317 = sbr.rel (0) target = $region13
  $region12: #{discriminator_forward.7} parent=0 // pred_region
    _
  $region13: #{discriminator_forward.7} parent=0 // pred_fallthru
    _
  // Predicated region
  $region14: #{discriminator_forward.7} parent=0 // pred_check
    _
  $region15: #{discriminator_forward.7} parent=0 // pred_check_branch
    %319 = sbr.rel (0) target = $region17
  $region16: #{discriminator_forward.7} parent=0 // pred_region
    _
  $region17: #{discriminator_forward.7} parent=0 // pred_fallthru
    _
  // Predicated region
  $region18: #{discriminator_forward.7} parent=0 // pred_check
    _
  $region19: #{discriminator_forward.7} parent=0 // pred_check_branch
    %321 = sbr.rel (0) target = $region21
  $region20: #{discriminator_forward.7} parent=0 // pred_region
    _
  $region21: #{discriminator_forward.7} parent=0 // pred_fallthru
    _
  // Predicated region
  $region22: #{discriminator_forward.7} parent=0 // pred_check
    _
  $region23: #{discriminator_forward.7} parent=0 // pred_check_branch
    %323 = sbr.rel (0) target = $region25
  $region24: #{discriminator_forward.7} parent=0 // pred_region
    _
  $region25: #{discriminator_forward.7} parent=0 // pred_fallthru
    _

// kernel: discriminator_forward.6
$region0: #{discriminator_forward.6}
  #allocation0 [shape = 'u32[]', space=smem, size = 0x4, offset = 0x4, fixed_abs, tag = 'smem constant byte address 0x4 - core index']
  #allocation1 [shape = 'u32[144,128]{1,0:T(1,128)}', space=vmem, size = 0x12000, scoped, tag = 'internal scratch']
  %s0 = inlined_call_operand.vmem [shape: bf16[512,48], index: 0, kind: input, shape index: {}]
  %s1 = inlined_call_operand.vmem [shape: bf16[48,128], index: 1, kind: input, shape index: {}]
  %s2 = inlined_call_operand.vmem [shape: bf16[512,128], index: 2, kind: output, shape index: {}]
  %s3 = sld [smem:[#allocation0]]
  $region18: #{discriminator_forward.6} parent=0
    _
  %s5 = ssub.s32 1, %s3
  %s6 = scalar_select 0, %s5, %s3
  // Predicated region
  $region2: #{discriminator_forward.6} parent=0 // pred_check
    _
  $region3: #{discriminator_forward.6} parent=0 // pred_check_branch
    %8 = sbr.rel (0) target = $region5
  $region4: #{discriminator_forward.6} parent=0 // pred_region
    _
  $region5: #{discriminator_forward.6} parent=0 // pred_fallthru
    _
  // Predicated region
  $region6: #{discriminator_forward.6} parent=0 // pred_check
    _
  $region7: #{discriminator_forward.6} parent=0 // pred_check_branch
    %10 = sbr.rel (0) target = $region9
  $region8: #{discriminator_forward.6} parent=0 // pred_region
    _
  $region9: #{discriminator_forward.6} parent=0 // pred_fallthru
    _
  %v12 = vld [vmem:[%s0] sm:$0xf]
  %v13 = vld [vmem:[%s0 + $0x4] sm:$0xf]
  %v14 = vld [vmem:[%s0 + $0x8] sm:$0xf]
  %v15 = vld [vmem:[%s0 + $0xc] sm:$0xf]
  %v16 = vld [vmem:[%s0 + $0x10] sm:$0xf]
  %v17 = vld [vmem:[%s0 + $0x14] sm:$0xf]
  %v18 = vld [vmem:[%s0 + $0x18] sm:$0xf]
  %v19 = vld [vmem:[%s0 + $0x1c] sm:$0xf]
  %v20 = vld [vmem:[%s0 + $0x20] sm:$0xf]
  %v21 = vld [vmem:[%s0 + $0x24] sm:$0xf]
  %v22 = vld [vmem:[%s0 + $0x28] sm:$0xf]
  %v23 = vld [vmem:[%s0 + $0x2c] sm:$0xf]
  %v24 = vld [vmem:[%s0 + $0x30] sm:$0xf]
  %v25 = vld [vmem:[%s0 + $0x34] sm:$0xf]
  %v26 = vld [vmem:[%s0 + $0x38] sm:$0xf]
  %v27 = vld [vmem:[%s0 + $0x3c] sm:$0xf]
  %v28 = vld [vmem:[%s0 + $0x40] sm:$0xf]
  %v29 = vld [vmem:[%s0 + $0x44] sm:$0xf]
  %v30 = vld [vmem:[%s0 + $0x48] sm:$0xf]
  %v31 = vld [vmem:[%s0 + $0x4c] sm:$0xf]
  %v32 = vld [vmem:[%s0 + $0x50] sm:$0xf]
  %v33 = vld [vmem:[%s0 + $0x54] sm:$0xf]
  %v34 = vld [vmem:[%s0 + $0x58] sm:$0xf]
  %v35 = vld [vmem:[%s0 + $0x5c] sm:$0xf]
  %v36 = vld [vmem:[%s0 + $0x60] sm:$0xf]
  %v37 = vld [vmem:[%s0 + $0x64] sm:$0xf]
  %v38 = vld [vmem:[%s0 + $0x68] sm:$0xf]
  %v39 = vld [vmem:[%s0 + $0x6c] sm:$0xf]
  %v40 = vld [vmem:[%s0 + $0x70] sm:$0xf]
  %v41 = vld [vmem:[%s0 + $0x74] sm:$0xf]
  %v42 = vld [vmem:[%s0 + $0x78] sm:$0xf]
  %v43 = vld [vmem:[%s0 + $0x7c] sm:$0xf]
  %v44 = vld [vmem:[%s0 + $0x80] sm:$0xf]
  %v45 = vld [vmem:[%s0 + $0x84] sm:$0xf]
  %v46 = vld [vmem:[%s0 + $0x88] sm:$0xf]
  %v47 = vld [vmem:[%s0 + $0x8c] sm:$0xf]
  %v48 = vld [vmem:[%s0 + $0x90] sm:$0xf]
  %v49 = vld [vmem:[%s0 + $0x94] sm:$0xf]
  %v50 = vld [vmem:[%s0 + $0x98] sm:$0xf]
  %v51 = vld [vmem:[%s0 + $0x9c] sm:$0xf]
  %v52 = vld [vmem:[%s0 + $0xa0] sm:$0xf]
  %v53 = vld [vmem:[%s0 + $0xa4] sm:$0xf]
  %v54 = vld [vmem:[%s0 + $0xa8] sm:$0xf]
  %v55 = vld [vmem:[%s0 + $0xac] sm:$0xf]
  %v56 = vld [vmem:[%s0 + $0xb0] sm:$0xf]
  %v57 = vld [vmem:[%s0 + $0xb4] sm:$0xf]
  %v58 = vld [vmem:[%s0 + $0xb8] sm:$0xf]
  %v59 = vld [vmem:[%s0 + $0xbc] sm:$0xf]
  %v60 = vld [vmem:[%s0 + $0xc0] sm:$0xf]
  %v61 = vld [vmem:[%s0 + $0xc4] sm:$0xf]
  %v62 = vld [vmem:[%s0 + $0xc8] sm:$0xf]
  %v63 = vld [vmem:[%s0 + $0xcc] sm:$0xf]
  %v64 = vld [vmem:[%s0 + $0xd0] sm:$0xf]
  %v65 = vld [vmem:[%s0 + $0xd4] sm:$0xf]
  %v66 = vld [vmem:[%s0 + $0xd8] sm:$0xf]
  %v67 = vld [vmem:[%s0 + $0xdc] sm:$0xf]
  %v68 = vld [vmem:[%s0 + $0xe0] sm:$0xf]
  %v69 = vld [vmem:[%s0 + $0xe4] sm:$0xf]
  %v70 = vld [vmem:[%s0 + $0xe8] sm:$0xf]
  %v71 = vld [vmem:[%s0 + $0xec] sm:$0xf]
  %v72 = vld [vmem:[%s0 + $0xf0] sm:$0xf]
  %v73 = vld [vmem:[%s0 + $0xf4] sm:$0xf]
  %v74 = vld [vmem:[%s0 + $0xf8] sm:$0xf]
  %v75 = vld [vmem:[%s0 + $0xfc] sm:$0xf]
  %v76 = vld [vmem:[%s1] sm:$0xf]
  %v77 = vld [vmem:[%s1 + $0x4] sm:$0xf]
  %v78 = vld [vmem:[%s1 + $0x8] sm:$0xf]
  %v79 = vld [vmem:[%s1 + $0xc] sm:$0xf]
  %v80 = vld [vmem:[%s1 + $0x10] sm:$0xf]
  %v81 = vld [vmem:[%s1 + $0x14] sm:$0xf]
  %v146 = vunpack.c.l.b16 %v12
  %v147 = vunpack.c.l.b16 %v13
  %v148 = vunpack.c.l.b16 %v14
  %v149 = vunpack.c.l.b16 %v15
  %v150 = vunpack.c.l.b16 %v16
  %v151 = vunpack.c.l.b16 %v17
  %v152 = vunpack.c.l.b16 %v18
  %v153 = vunpack.c.l.b16 %v19
  %v154 = vunpack.c.l.b16 %v20
  %v155 = vunpack.c.l.b16 %v21
  %v156 = vunpack.c.l.b16 %v22
  %v157 = vunpack.c.l.b16 %v23
  %v158 = vunpack.c.l.b16 %v24
  %v159 = vunpack.c.l.b16 %v25
  %v160 = vunpack.c.l.b16 %v26
  %v161 = vunpack.c.l.b16 %v27
  %v162 = vunpack.c.l.b16 %v28
  %v163 = vunpack.c.l.b16 %v29
  %v164 = vunpack.c.l.b16 %v30
  %v165 = vunpack.c.l.b16 %v31
  %v166 = vunpack.c.l.b16 %v32
  %v167 = vunpack.c.l.b16 %v33
  %v168 = vunpack.c.l.b16 %v34
  %v169 = vunpack.c.l.b16 %v35
  %v170 = vunpack.c.l.b16 %v36
  %v171 = vunpack.c.l.b16 %v37
  %v172 = vunpack.c.l.b16 %v38
  %v173 = vunpack.c.l.b16 %v39
  %v174 = vunpack.c.l.b16 %v40
  %v175 = vunpack.c.l.b16 %v41
  %v176 = vunpack.c.l.b16 %v42
  %v177 = vunpack.c.l.b16 %v43
  %v178 = vunpack.c.l.b16 %v44
  %v179 = vunpack.c.l.b16 %v45
  %v180 = vunpack.c.l.b16 %v46
  %v181 = vunpack.c.l.b16 %v47
  %v182 = vunpack.c.l.b16 %v48
  %v183 = vunpack.c.l.b16 %v49
  %v184 = vunpack.c.l.b16 %v50
  %v185 = vunpack.c.l.b16 %v51
  %v186 = vunpack.c.l.b16 %v52
  %v187 = vunpack.c.l.b16 %v53
  %v188 = vunpack.c.l.b16 %v54
  %v189 = vunpack.c.l.b16 %v55
  %v190 = vunpack.c.l.b16 %v56
  %v191 = vunpack.c.l.b16 %v57
  %v192 = vunpack.c.l.b16 %v58
  %v193 = vunpack.c.l.b16 %v59
  %v194 = vunpack.c.l.b16 %v60
  %v195 = vunpack.c.l.b16 %v61
  %v196 = vunpack.c.l.b16 %v62
  %v197 = vunpack.c.l.b16 %v63
  %v198 = vunpack.c.l.b16 %v64
  %v199 = vunpack.c.l.b16 %v65
  %v200 = vunpack.c.l.b16 %v66
  %v201 = vunpack.c.l.b16 %v67
  %v202 = vunpack.c.l.b16 %v68
  %v203 = vunpack.c.l.b16 %v69
  %v204 = vunpack.c.l.b16 %v70
  %v205 = vunpack.c.l.b16 %v71
  %v206 = vunpack.c.l.b16 %v72
  %v207 = vunpack.c.l.b16 %v73
  %v208 = vunpack.c.l.b16 %v74
  %v209 = vunpack.c.l.b16 %v75
  %v210 = vpack.c.b16 %v147, %v146
  %v211 = vpack.c.b16 %v149, %v148
  %v212 = vpack.c.b16 %v151, %v150
  %v213 = vpack.c.b16 %v153, %v152
  %v214 = vpack.c.b16 %v155, %v154
  %v215 = vpack.c.b16 %v157, %v156
  %v216 = vpack.c.b16 %v159, %v158
  %v217 = vpack.c.b16 %v161, %v160
  %v218 = vpack.c.b16 %v163, %v162
  %v219 = vpack.c.b16 %v165, %v164
  %v220 = vpack.c.b16 %v167, %v166
  %v221 = vpack.c.b16 %v169, %v168
  %v222 = vpack.c.b16 %v171, %v170
  %v223 = vpack.c.b16 %v173, %v172
  %v224 = vpack.c.b16 %v175, %v174
  %v225 = vpack.c.b16 %v177, %v176
  %v226 = vpack.c.b16 %v179, %v178
  %v227 = vpack.c.b16 %v181, %v180
  %v228 = vpack.c.b16 %v183, %v182
  %v229 = vpack.c.b16 %v185, %v184
  %v230 = vpack.c.b16 %v187, %v186
  %v231 = vpack.c.b16 %v189, %v188
  %v232 = vpack.c.b16 %v191, %v190
  %v233 = vpack.c.b16 %v193, %v192
  %v234 = vpack.c.b16 %v195, %v194
  %v235 = vpack.c.b16 %v197, %v196
  %v236 = vpack.c.b16 %v199, %v198
  %v237 = vpack.c.b16 %v201, %v200
  %v238 = vpack.c.b16 %v203, %v202
  %v239 = vpack.c.b16 %v205, %v204
  %v240 = vpack.c.b16 %v207, %v206
  %v241 = vpack.c.b16 %v209, %v208
  %v248 = vunpack.c.l.b16 %v76
  %v249 = vunpack.c.l.b16 %v77
  %v250 = vunpack.c.l.b16 %v78
  %v251 = vunpack.c.l.b16 %v79
  %v252 = vunpack.c.l.b16 %v80
  %v253 = vunpack.c.l.b16 %v81
  %v254 = vpack.c.b16 %v249, %v248
  %v255 = vpack.c.b16 %v251, %v250
  %v256 = vpack.c.b16 %v253, %v252
  %vm260 = vcmask 392192
  %v262 = vsel %vm260, %v210, 0
  %v265 = vsel %vm260, %v211, 0
  %v268 = vsel %vm260, %v212, 0
  %v271 = vsel %vm260, %v213, 0
  %v274 = vsel %vm260, %v214, 0
  %v277 = vsel %vm260, %v215, 0
  %v280 = vsel %vm260, %v216, 0
  %v283 = vsel %vm260, %v217, 0
  %v286 = vsel %vm260, %v218, 0
  %v289 = vsel %vm260, %v219, 0
  %v292 = vsel %vm260, %v220, 0
  %v295 = vsel %vm260, %v221, 0
  %v298 = vsel %vm260, %v222, 0
  %v301 = vsel %vm260, %v223, 0
  %v304 = vsel %vm260, %v224, 0
  %v307 = vsel %vm260, %v225, 0
  %v310 = vsel %vm260, %v226, 0
  %v313 = vsel %vm260, %v227, 0
  %v316 = vsel %vm260, %v228, 0
  %v319 = vsel %vm260, %v229, 0
  %v322 = vsel %vm260, %v230, 0
  %v325 = vsel %vm260, %v231, 0
  %v328 = vsel %vm260, %v232, 0
  %v331 = vsel %vm260, %v233, 0
  %v334 = vsel %vm260, %v234, 0
  %v337 = vsel %vm260, %v235, 0
  %v340 = vsel %vm260, %v236, 0
  %v343 = vsel %vm260, %v237, 0
  %v346 = vsel %vm260, %v238, 0
  %v349 = vsel %vm260, %v239, 0
  %v352 = vsel %vm260, %v240, 0
  %v355 = vsel %vm260, %v241, 0
  %357 = vmatprep.subr.bf16.mxu0 0
  %358 = vmatpush1.bf16.msra.mxu0 0
  %359 = vmatprep.subr.bf16.mxu0 0
  %360 = vmatpush1.bf16.msra.mxu0 0
  %361 = vmatprep.subr.bf16.mxu0 0
  %362 = vmatpush1.bf16.msra.mxu0 0
  %363 = vmatprep.subr.bf16.mxu0 0
  %364 = vmatpush1.bf16.msra.mxu0 0
  %365 = vmatprep.subr.bf16.mxu0 0
  %366 = vmatpush1.bf16.msra.mxu0 0
  %367 = vmatprep.subr.bf16.mxu0 0
  %368 = vmatpush1.bf16.msra.mxu0 %v256
  %369 = vmatprep.subr.bf16.mxu0 0
  %370 = vmatpush1.bf16.msra.mxu0 %v255
  %371 = vmatprep.subr.bf16.mxu0 0
  %372 = vmatpush1.bf16.msra.mxu0 %v254
  %373 = vmatprep.subr.bf16.mxu0 0
  %374 = vmatpush2.bf16.msra.mxu0 0
  %375 = vmatprep.subr.bf16.mxu0 0
  %376 = vmatpush2.bf16.msra.mxu0 0
  %377 = vmatprep.subr.bf16.mxu0 0
  %378 = vmatpush2.bf16.msra.mxu0 0
  %379 = vmatprep.subr.bf16.mxu0 0
  %380 = vmatpush2.bf16.msra.mxu0 0
  %381 = vmatprep.subr.bf16.mxu0 0
  %382 = vmatpush2.bf16.msra.mxu0 0
  %383 = vmatprep.subr.bf16.mxu0 0
  %384 = vmatpush2.bf16.msra.mxu0 0
  %385 = vmatprep.subr.bf16.mxu0 0
  %386 = vmatpush2.bf16.msra.mxu0 0
  %387 = vmatprep.subr.bf16.mxu0 0
  %388 = vmatpush2.bf16.msra.mxu0 0
  %389 = vmatprep.mubr.bf16.mxu0 0
  %390 = vmatmul.mubr.bf16.gmra.mxu0 %v262
  %v391 = vpop.f32.mrf.mxu0
  %v392 = vadd.f32 0.0, %v391
  %v393 = vpop.f32.mrf.mxu0
  %v394 = vpop.f32.mrf.mxu0
  %v395 = vadd.f32 0.0, %v394
  %v396 = vpop.f32.mrf.mxu0
  %397 = vmatprep.mubr.bf16.mxu0 0
  %398 = vmatmul.mubr.bf16.gmra.mxu0 %v265
  %v399 = vpop.f32.mrf.mxu0
  %v400 = vadd.f32 0.0, %v399
  %v401 = vpop.f32.mrf.mxu0
  %v402 = vpop.f32.mrf.mxu0
  %v403 = vadd.f32 0.0, %v402
  %v404 = vpop.f32.mrf.mxu0
  %405 = vmatprep.mubr.bf16.mxu0 0
  %406 = vmatmul.mubr.bf16.gmra.mxu0 %v268
  %v407 = vpop.f32.mrf.mxu0
  %v408 = vadd.f32 0.0, %v407
  %v409 = vpop.f32.mrf.mxu0
  %v410 = vpop.f32.mrf.mxu0
  %v411 = vadd.f32 0.0, %v410
  %v412 = vpop.f32.mrf.mxu0
  %413 = vmatprep.mubr.bf16.mxu0 0
  %414 = vmatmul.mubr.bf16.gmra.mxu0 %v271
  %v415 = vpop.f32.mrf.mxu0
  %v416 = vadd.f32 0.0, %v415
  %v417 = vpop.f32.mrf.mxu0
  %v418 = vpop.f32.mrf.mxu0
  %v419 = vadd.f32 0.0, %v418
  %v420 = vpop.f32.mrf.mxu0
  %421 = vmatprep.mubr.bf16.mxu0 0
  %422 = vmatmul.mubr.bf16.gmra.mxu0 %v274
  %v423 = vpop.f32.mrf.mxu0
  %v424 = vadd.f32 0.0, %v423
  %v425 = vpop.f32.mrf.mxu0
  %v426 = vpop.f32.mrf.mxu0
  %v427 = vadd.f32 0.0, %v426
  %v428 = vpop.f32.mrf.mxu0
  %429 = vmatprep.mubr.bf16.mxu0 0
  %430 = vmatmul.mubr.bf16.gmra.mxu0 %v277
  %v431 = vpop.f32.mrf.mxu0
  %v432 = vadd.f32 0.0, %v431
  %v433 = vpop.f32.mrf.mxu0
  %v434 = vpop.f32.mrf.mxu0
  %v435 = vadd.f32 0.0, %v434
  %v436 = vpop.f32.mrf.mxu0
  %437 = vmatprep.mubr.bf16.mxu0 0
  %438 = vmatmul.mubr.bf16.gmra.mxu0 %v280
  %v439 = vpop.f32.mrf.mxu0
  %v440 = vadd.f32 0.0, %v439
  %v441 = vpop.f32.mrf.mxu0
  %v442 = vpop.f32.mrf.mxu0
  %v443 = vadd.f32 0.0, %v442
  %v444 = vpop.f32.mrf.mxu0
  %445 = vmatprep.mubr.bf16.mxu0 0
  %446 = vmatmul.mubr.bf16.gmra.mxu0 %v283
  %v447 = vpop.f32.mrf.mxu0
  %v448 = vadd.f32 0.0, %v447
  %v449 = vpop.f32.mrf.mxu0
  %v450 = vpop.f32.mrf.mxu0
  %v451 = vadd.f32 0.0, %v450
  %v452 = vpop.f32.mrf.mxu0
  %453 = vmatprep.mubr.bf16.mxu0 0
  %454 = vmatmul.mubr.bf16.gmra.mxu0 %v286
  %v455 = vpop.f32.mrf.mxu0
  %v456 = vadd.f32 0.0, %v455
  %v457 = vpop.f32.mrf.mxu0
  %v458 = vpop.f32.mrf.mxu0
  %v459 = vadd.f32 0.0, %v458
  %v460 = vpop.f32.mrf.mxu0
  %461 = vmatprep.mubr.bf16.mxu0 0
  %462 = vmatmul.mubr.bf16.gmra.mxu0 %v289
  %v463 = vpop.f32.mrf.mxu0
  %v464 = vadd.f32 0.0, %v463
  %v465 = vpop.f32.mrf.mxu0
  %v466 = vpop.f32.mrf.mxu0
  %v467 = vadd.f32 0.0, %v466
  %v468 = vpop.f32.mrf.mxu0
  %469 = vmatprep.mubr.bf16.mxu0 0
  %470 = vmatmul.mubr.bf16.gmra.mxu0 %v292
  %v471 = vpop.f32.mrf.mxu0
  %v472 = vadd.f32 0.0, %v471
  %v473 = vpop.f32.mrf.mxu0
  %v474 = vpop.f32.mrf.mxu0
  %v475 = vadd.f32 0.0, %v474
  %v476 = vpop.f32.mrf.mxu0
  %477 = vmatprep.mubr.bf16.mxu0 0
  %478 = vmatmul.mubr.bf16.gmra.mxu0 %v295
  %v479 = vpop.f32.mrf.mxu0
  %v480 = vadd.f32 0.0, %v479
  %v481 = vpop.f32.mrf.mxu0
  %v482 = vpop.f32.mrf.mxu0
  %v483 = vadd.f32 0.0, %v482
  %v484 = vpop.f32.mrf.mxu0
  %485 = vmatprep.mubr.bf16.mxu0 0
  %486 = vmatmul.mubr.bf16.gmra.mxu0 %v298
  %v487 = vpop.f32.mrf.mxu0
  %v488 = vadd.f32 0.0, %v487
  %v489 = vpop.f32.mrf.mxu0
  %v490 = vpop.f32.mrf.mxu0
  %v491 = vadd.f32 0.0, %v490
  %v492 = vpop.f32.mrf.mxu0
  %493 = vmatprep.mubr.bf16.mxu0 0
  %494 = vmatmul.mubr.bf16.gmra.mxu0 %v301
  %v495 = vpop.f32.mrf.mxu0
  %v496 = vadd.f32 0.0, %v495
  %v497 = vpop.f32.mrf.mxu0
  %v498 = vpop.f32.mrf.mxu0
  %v499 = vadd.f32 0.0, %v498
  %v500 = vpop.f32.mrf.mxu0
  %501 = vmatprep.mubr.bf16.mxu0 0
  %502 = vmatmul.mubr.bf16.gmra.mxu0 %v304
  %v503 = vpop.f32.mrf.mxu0
  %v504 = vadd.f32 0.0, %v503
  %v505 = vpop.f32.mrf.mxu0
  %v506 = vpop.f32.mrf.mxu0
  %v507 = vadd.f32 0.0, %v506
  %v508 = vpop.f32.mrf.mxu0
  %509 = vmatprep.mubr.bf16.mxu0 0
  %510 = vmatmul.mubr.bf16.gmra.mxu0 %v307
  %v511 = vpop.f32.mrf.mxu0
  %v512 = vadd.f32 0.0, %v511
  %v513 = vpop.f32.mrf.mxu0
  %v514 = vpop.f32.mrf.mxu0
  %v515 = vadd.f32 0.0, %v514
  %v516 = vpop.f32.mrf.mxu0
  %517 = vmatprep.mubr.bf16.mxu0 0
  %518 = vmatmul.mubr.bf16.gmra.mxu0 %v310
  %v519 = vpop.f32.mrf.mxu0
  %v520 = vadd.f32 0.0, %v519
  %v521 = vpop.f32.mrf.mxu0
  %v522 = vpop.f32.mrf.mxu0
  %v523 = vadd.f32 0.0, %v522
  %v524 = vpop.f32.mrf.mxu0
  %525 = vmatprep.mubr.bf16.mxu0 0
  %526 = vmatmul.mubr.bf16.gmra.mxu0 %v313
  %v527 = vpop.f32.mrf.mxu0
  %v528 = vadd.f32 0.0, %v527
  %v529 = vpop.f32.mrf.mxu0
  %v530 = vpop.f32.mrf.mxu0
  %v531 = vadd.f32 0.0, %v530
  %v532 = vpop.f32.mrf.mxu0
  %533 = vmatprep.mubr.bf16.mxu0 0
  %534 = vmatmul.mubr.bf16.gmra.mxu0 %v316
  %v535 = vpop.f32.mrf.mxu0
  %v536 = vadd.f32 0.0, %v535
  %v537 = vpop.f32.mrf.mxu0
  %v538 = vpop.f32.mrf.mxu0
  %v539 = vadd.f32 0.0, %v538
  %v540 = vpop.f32.mrf.mxu0
  %541 = vmatprep.mubr.bf16.mxu0 0
  %542 = vmatmul.mubr.bf16.gmra.mxu0 %v319
  %v543 = vpop.f32.mrf.mxu0
  %v544 = vadd.f32 0.0, %v543
  %v545 = vpop.f32.mrf.mxu0
  %v546 = vpop.f32.mrf.mxu0
  %v547 = vadd.f32 0.0, %v546
  %v548 = vpop.f32.mrf.mxu0
  %549 = vmatprep.mubr.bf16.mxu0 0
  %550 = vmatmul.mubr.bf16.gmra.mxu0 %v322
  %v551 = vpop.f32.mrf.mxu0
  %v552 = vadd.f32 0.0, %v551
  %v553 = vpop.f32.mrf.mxu0
  %v554 = vpop.f32.mrf.mxu0
  %v555 = vadd.f32 0.0, %v554
  %v556 = vpop.f32.mrf.mxu0
  %557 = vmatprep.mubr.bf16.mxu0 0
  %558 = vmatmul.mubr.bf16.gmra.mxu0 %v325
  %v559 = vpop.f32.mrf.mxu0
  %v560 = vadd.f32 0.0, %v559
  %v561 = vpop.f32.mrf.mxu0
  %v562 = vpop.f32.mrf.mxu0
  %v563 = vadd.f32 0.0, %v562
  %v564 = vpop.f32.mrf.mxu0
  %565 = vmatprep.mubr.bf16.mxu0 0
  %566 = vmatmul.mubr.bf16.gmra.mxu0 %v328
  %v567 = vpop.f32.mrf.mxu0
  %v568 = vadd.f32 0.0, %v567
  %v569 = vpop.f32.mrf.mxu0
  %v570 = vpop.f32.mrf.mxu0
  %v571 = vadd.f32 0.0, %v570
  %v572 = vpop.f32.mrf.mxu0
  %573 = vmatprep.mubr.bf16.mxu0 0
  %574 = vmatmul.mubr.bf16.gmra.mxu0 %v331
  %v575 = vpop.f32.mrf.mxu0
  %v576 = vadd.f32 0.0, %v575
  %v577 = vpop.f32.mrf.mxu0
  %v578 = vpop.f32.mrf.mxu0
  %v579 = vadd.f32 0.0, %v578
  %v580 = vpop.f32.mrf.mxu0
  %581 = vmatprep.mubr.bf16.mxu0 0
  %582 = vmatmul.mubr.bf16.gmra.mxu0 %v334
  %v583 = vpop.f32.mrf.mxu0
  %v584 = vadd.f32 0.0, %v583
  %v585 = vpop.f32.mrf.mxu0
  %v586 = vpop.f32.mrf.mxu0
  %v587 = vadd.f32 0.0, %v586
  %v588 = vpop.f32.mrf.mxu0
  %589 = vmatprep.mubr.bf16.mxu0 0
  %590 = vmatmul.mubr.bf16.gmra.mxu0 %v337
  %v591 = vpop.f32.mrf.mxu0
  %v592 = vadd.f32 0.0, %v591
  %v593 = vpop.f32.mrf.mxu0
  %v594 = vpop.f32.mrf.mxu0
  %v595 = vadd.f32 0.0, %v594
  %v596 = vpop.f32.mrf.mxu0
  %597 = vmatprep.mubr.bf16.mxu0 0
  %598 = vmatmul.mubr.bf16.gmra.mxu0 %v340
  %v599 = vpop.f32.mrf.mxu0
  %v600 = vadd.f32 0.0, %v599
  %v601 = vpop.f32.mrf.mxu0
  %v602 = vpop.f32.mrf.mxu0
  %v603 = vadd.f32 0.0, %v602
  %v604 = vpop.f32.mrf.mxu0
  %605 = vmatprep.mubr.bf16.mxu0 0
  %606 = vmatmul.mubr.bf16.gmra.mxu0 %v343
  %v607 = vpop.f32.mrf.mxu0
  %v608 = vadd.f32 0.0, %v607
  %v609 = vpop.f32.mrf.mxu0
  %v610 = vpop.f32.mrf.mxu0
  %v611 = vadd.f32 0.0, %v610
  %v612 = vpop.f32.mrf.mxu0
  %613 = vmatprep.mubr.bf16.mxu0 0
  %614 = vmatmul.mubr.bf16.gmra.mxu0 %v346
  %v615 = vpop.f32.mrf.mxu0
  %v616 = vadd.f32 0.0, %v615
  %v617 = vpop.f32.mrf.mxu0
  %v618 = vpop.f32.mrf.mxu0
  %v619 = vadd.f32 0.0, %v618
  %v620 = vpop.f32.mrf.mxu0
  %621 = vmatprep.mubr.bf16.mxu0 0
  %622 = vmatmul.mubr.bf16.gmra.mxu0 %v349
  %v623 = vpop.f32.mrf.mxu0
  %v624 = vadd.f32 0.0, %v623
  %v625 = vpop.f32.mrf.mxu0
  %v626 = vpop.f32.mrf.mxu0
  %v627 = vadd.f32 0.0, %v626
  %v628 = vpop.f32.mrf.mxu0
  %629 = vmatprep.mubr.bf16.mxu0 0
  %630 = vmatmul.mubr.bf16.gmra.mxu0 %v352
  %v631 = vpop.f32.mrf.mxu0
  %v632 = vadd.f32 0.0, %v631
  %v633 = vpop.f32.mrf.mxu0
  %v634 = vpop.f32.mrf.mxu0
  %v635 = vadd.f32 0.0, %v634
  %v636 = vpop.f32.mrf.mxu0
  %637 = vmatprep.mubr.bf16.mxu0 0
  %638 = vmatmul.mubr.bf16.gmra.mxu0 %v355
  %v639 = vpop.f32.mrf.mxu0
  %v640 = vadd.f32 0.0, %v639
  %v641 = vpop.f32.mrf.mxu0
  %v642 = vpop.f32.mrf.mxu0
  %v643 = vadd.f32 0.0, %v642
  %v644 = vpop.f32.mrf.mxu0
  %645 = vdwg.mxu0
  %vm646 = vcmp.gt.f32.partialorder %v392, 0.0
  %vm647 = vcmp.gt.f32.partialorder %v395, 0.0
  %vm648 = vcmp.gt.f32.partialorder %v400, 0.0
  %vm649 = vcmp.gt.f32.partialorder %v403, 0.0
  %vm650 = vcmp.gt.f32.partialorder %v408, 0.0
  %vm651 = vcmp.gt.f32.partialorder %v411, 0.0
  %vm652 = vcmp.gt.f32.partialorder %v416, 0.0
  %vm653 = vcmp.gt.f32.partialorder %v419, 0.0
  %vm654 = vcmp.gt.f32.partialorder %v424, 0.0
  %vm655 = vcmp.gt.f32.partialorder %v427, 0.0
  %vm656 = vcmp.gt.f32.partialorder %v432, 0.0
  %vm657 = vcmp.gt.f32.partialorder %v435, 0.0
  %vm658 = vcmp.gt.f32.partialorder %v440, 0.0
  %vm659 = vcmp.gt.f32.partialorder %v443, 0.0
  %vm660 = vcmp.gt.f32.partialorder %v448, 0.0
  %vm661 = vcmp.gt.f32.partialorder %v451, 0.0
  %vm662 = vcmp.gt.f32.partialorder %v456, 0.0
  %vm663 = vcmp.gt.f32.partialorder %v459, 0.0
  %vm664 = vcmp.gt.f32.partialorder %v464, 0.0
  %vm665 = vcmp.gt.f32.partialorder %v467, 0.0
  %vm666 = vcmp.gt.f32.partialorder %v472, 0.0
  %vm667 = vcmp.gt.f32.partialorder %v475, 0.0
  %vm668 = vcmp.gt.f32.partialorder %v480, 0.0
  %vm669 = vcmp.gt.f32.partialorder %v483, 0.0
  %vm670 = vcmp.gt.f32.partialorder %v488, 0.0
  %vm671 = vcmp.gt.f32.partialorder %v491, 0.0
  %vm672 = vcmp.gt.f32.partialorder %v496, 0.0
  %vm673 = vcmp.gt.f32.partialorder %v499, 0.0
  %vm674 = vcmp.gt.f32.partialorder %v504, 0.0
  %vm675 = vcmp.gt.f32.partialorder %v507, 0.0
  %vm676 = vcmp.gt.f32.partialorder %v512, 0.0
  %vm677 = vcmp.gt.f32.partialorder %v515, 0.0
  %vm678 = vcmp.gt.f32.partialorder %v520, 0.0
  %vm679 = vcmp.gt.f32.partialorder %v523, 0.0
  %vm680 = vcmp.gt.f32.partialorder %v528, 0.0
  %vm681 = vcmp.gt.f32.partialorder %v531, 0.0
  %vm682 = vcmp.gt.f32.partialorder %v536, 0.0
  %vm683 = vcmp.gt.f32.partialorder %v539, 0.0
  %vm684 = vcmp.gt.f32.partialorder %v544, 0.0
  %vm685 = vcmp.gt.f32.partialorder %v547, 0.0
  %vm686 = vcmp.gt.f32.partialorder %v552, 0.0
  %vm687 = vcmp.gt.f32.partialorder %v555, 0.0
  %vm688 = vcmp.gt.f32.partialorder %v560, 0.0
  %vm689 = vcmp.gt.f32.partialorder %v563, 0.0
  %vm690 = vcmp.gt.f32.partialorder %v568, 0.0
  %vm691 = vcmp.gt.f32.partialorder %v571, 0.0
  %vm692 = vcmp.gt.f32.partialorder %v576, 0.0
  %vm693 = vcmp.gt.f32.partialorder %v579, 0.0
  %vm694 = vcmp.gt.f32.partialorder %v584, 0.0
  %vm695 = vcmp.gt.f32.partialorder %v587, 0.0
  %vm696 = vcmp.gt.f32.partialorder %v592, 0.0
  %vm697 = vcmp.gt.f32.partialorder %v595, 0.0
  %vm698 = vcmp.gt.f32.partialorder %v600, 0.0
  %vm699 = vcmp.gt.f32.partialorder %v603, 0.0
  %vm700 = vcmp.gt.f32.partialorder %v608, 0.0
  %vm701 = vcmp.gt.f32.partialorder %v611, 0.0
  %vm702 = vcmp.gt.f32.partialorder %v616, 0.0
  %vm703 = vcmp.gt.f32.partialorder %v619, 0.0
  %vm704 = vcmp.gt.f32.partialorder %v624, 0.0
  %vm705 = vcmp.gt.f32.partialorder %v627, 0.0
  %vm706 = vcmp.gt.f32.partialorder %v632, 0.0
  %vm707 = vcmp.gt.f32.partialorder %v635, 0.0
  %vm708 = vcmp.gt.f32.partialorder %v640, 0.0
  %vm709 = vcmp.gt.f32.partialorder %v643, 0.0
  %v710 = vmul.f32 %v392, 0.2
  %v711 = vmul.f32 %v395, 0.2
  %v712 = vmul.f32 %v400, 0.2
  %v713 = vmul.f32 %v403, 0.2
  %v714 = vmul.f32 %v408, 0.2
  %v715 = vmul.f32 %v411, 0.2
  %v716 = vmul.f32 %v416, 0.2
  %v717 = vmul.f32 %v419, 0.2
  %v718 = vmul.f32 %v424, 0.2
  %v719 = vmul.f32 %v427, 0.2
  %v720 = vmul.f32 %v432, 0.2
  %v721 = vmul.f32 %v435, 0.2
  %v722 = vmul.f32 %v440, 0.2
  %v723 = vmul.f32 %v443, 0.2
  %v724 = vmul.f32 %v448, 0.2
  %v725 = vmul.f32 %v451, 0.2
  %v726 = vmul.f32 %v456, 0.2
  %v727 = vmul.f32 %v459, 0.2
  %v728 = vmul.f32 %v464, 0.2
  %v729 = vmul.f32 %v467, 0.2
  %v730 = vmul.f32 %v472, 0.2
  %v731 = vmul.f32 %v475, 0.2
  %v732 = vmul.f32 %v480, 0.2
  %v733 = vmul.f32 %v483, 0.2
  %v734 = vmul.f32 %v488, 0.2
  %v735 = vmul.f32 %v491, 0.2
  %v736 = vmul.f32 %v496, 0.2
  %v737 = vmul.f32 %v499, 0.2
  %v738 = vmul.f32 %v504, 0.2
  %v739 = vmul.f32 %v507, 0.2
  %v740 = vmul.f32 %v512, 0.2
  %v741 = vmul.f32 %v515, 0.2
  %v742 = vmul.f32 %v520, 0.2
  %v743 = vmul.f32 %v523, 0.2
  %v744 = vmul.f32 %v528, 0.2
  %v745 = vmul.f32 %v531, 0.2
  %v746 = vmul.f32 %v536, 0.2
  %v747 = vmul.f32 %v539, 0.2
  %v748 = vmul.f32 %v544, 0.2
  %v749 = vmul.f32 %v547, 0.2
  %v750 = vmul.f32 %v552, 0.2
  %v751 = vmul.f32 %v555, 0.2
  %v752 = vmul.f32 %v560, 0.2
  %v753 = vmul.f32 %v563, 0.2
  %v754 = vmul.f32 %v568, 0.2
  %v755 = vmul.f32 %v571, 0.2
  %v756 = vmul.f32 %v576, 0.2
  %v757 = vmul.f32 %v579, 0.2
  %v758 = vmul.f32 %v584, 0.2
  %v759 = vmul.f32 %v587, 0.2
  %v760 = vmul.f32 %v592, 0.2
  %v761 = vmul.f32 %v595, 0.2
  %v762 = vmul.f32 %v600, 0.2
  %v763 = vmul.f32 %v603, 0.2
  %v764 = vmul.f32 %v608, 0.2
  %v765 = vmul.f32 %v611, 0.2
  %v766 = vmul.f32 %v616, 0.2
  %v767 = vmul.f32 %v619, 0.2
  %v768 = vmul.f32 %v624, 0.2
  %v769 = vmul.f32 %v627, 0.2
  %v770 = vmul.f32 %v632, 0.2
  %v771 = vmul.f32 %v635, 0.2
  %v772 = vmul.f32 %v640, 0.2
  %v773 = vmul.f32 %v643, 0.2
  %v774 = vsel %vm646, %v392, %v710
  %v775 = vsel %vm647, %v395, %v711
  %v776 = vsel %vm648, %v400, %v712
  %v777 = vsel %vm649, %v403, %v713
  %v778 = vsel %vm650, %v408, %v714
  %v779 = vsel %vm651, %v411, %v715
  %v780 = vsel %vm652, %v416, %v716
  %v781 = vsel %vm653, %v419, %v717
  %v782 = vsel %vm654, %v424, %v718
  %v783 = vsel %vm655, %v427, %v719
  %v784 = vsel %vm656, %v432, %v720
  %v785 = vsel %vm657, %v435, %v721
  %v786 = vsel %vm658, %v440, %v722
  %v787 = vsel %vm659, %v443, %v723
  %v788 = vsel %vm660, %v448, %v724
  %v789 = vsel %vm661, %v451, %v725
  %v790 = vsel %vm662, %v456, %v726
  %v791 = vsel %vm663, %v459, %v727
  %v792 = vsel %vm664, %v464, %v728
  %v793 = vsel %vm665, %v467, %v729
  %v794 = vsel %vm666, %v472, %v730
  %v795 = vsel %vm667, %v475, %v731
  %v796 = vsel %vm668, %v480, %v732
  %v797 = vsel %vm669, %v483, %v733
  %v798 = vsel %vm670, %v488, %v734
  %v799 = vsel %vm671, %v491, %v735
  %v800 = vsel %vm672, %v496, %v736
  %v801 = vsel %vm673, %v499, %v737
  %v802 = vsel %vm674, %v504, %v738
  %v803 = vsel %vm675, %v507, %v739
  %v804 = vsel %vm676, %v512, %v740
  %v805 = vsel %vm677, %v515, %v741
  %v806 = vsel %vm678, %v520, %v742
  %v807 = vsel %vm679, %v523, %v743
  %v808 = vsel %vm680, %v528, %v744
  %v809 = vsel %vm681, %v531, %v745
  %v810 = vsel %vm682, %v536, %v746
  %v811 = vsel %vm683, %v539, %v747
  %v812 = vsel %vm684, %v544, %v748
  %v813 = vsel %vm685, %v547, %v749
  %v814 = vsel %vm686, %v552, %v750
  %v815 = vsel %vm687, %v555, %v751
  %v816 = vsel %vm688, %v560, %v752
  %v817 = vsel %vm689, %v563, %v753
  %v818 = vsel %vm690, %v568, %v754
  %v819 = vsel %vm691, %v571, %v755
  %v820 = vsel %vm692, %v576, %v756
  %v821 = vsel %vm693, %v579, %v757
  %v822 = vsel %vm694, %v584, %v758
  %v823 = vsel %vm695, %v587, %v759
  %v824 = vsel %vm696, %v592, %v760
  %v825 = vsel %vm697, %v595, %v761
  %v826 = vsel %vm698, %v600, %v762
  %v827 = vsel %vm699, %v603, %v763
  %v828 = vsel %vm700, %v608, %v764
  %v829 = vsel %vm701, %v611, %v765
  %v830 = vsel %vm702, %v616, %v766
  %v831 = vsel %vm703, %v619, %v767
  %v832 = vsel %vm704, %v624, %v768
  %v833 = vsel %vm705, %v627, %v769
  %v834 = vsel %vm706, %v632, %v770
  %v835 = vsel %vm707, %v635, %v771
  %v836 = vsel %vm708, %v640, %v772
  %v837 = vsel %vm709, %v643, %v773
  %v838 = vpack.c.bf16 %v775, %v774
  %v839 = vpack.c.bf16 %v777, %v776
  %v840 = vpack.c.bf16 %v779, %v778
  %v841 = vpack.c.bf16 %v781, %v780
  %v842 = vpack.c.bf16 %v783, %v782
  %v843 = vpack.c.bf16 %v785, %v784
  %v844 = vpack.c.bf16 %v787, %v786
  %v845 = vpack.c.bf16 %v789, %v788
  %v846 = vpack.c.bf16 %v791, %v790
  %v847 = vpack.c.bf16 %v793, %v792
  %v848 = vpack.c.bf16 %v795, %v794
  %v849 = vpack.c.bf16 %v797, %v796
  %v850 = vpack.c.bf16 %v799, %v798
  %v851 = vpack.c.bf16 %v801, %v800
  %v852 = vpack.c.bf16 %v803, %v802
  %v853 = vpack.c.bf16 %v805, %v804
  %v854 = vpack.c.bf16 %v807, %v806
  %v855 = vpack.c.bf16 %v809, %v808
  %v856 = vpack.c.bf16 %v811, %v810
  %v857 = vpack.c.bf16 %v813, %v812
  %v858 = vpack.c.bf16 %v815, %v814
  %v859 = vpack.c.bf16 %v817, %v816
  %v860 = vpack.c.bf16 %v819, %v818
  %v861 = vpack.c.bf16 %v821, %v820
  %v862 = vpack.c.bf16 %v823, %v822
  %v863 = vpack.c.bf16 %v825, %v824
  %v864 = vpack.c.bf16 %v827, %v826
  %v865 = vpack.c.bf16 %v829, %v828
  %v866 = vpack.c.bf16 %v831, %v830
  %v867 = vpack.c.bf16 %v833, %v832
  %v868 = vpack.c.bf16 %v835, %v834
  %v869 = vpack.c.bf16 %v837, %v836
  %v902 = vunpack.c.l.b16 %v838
  %v903 = vunpack.c.h.b16 %v838
  %v904 = vunpack.c.l.b16 %v839
  %v905 = vunpack.c.h.b16 %v839
  %v906 = vunpack.c.l.b16 %v840
  %v907 = vunpack.c.h.b16 %v840
  %v908 = vunpack.c.l.b16 %v841
  %v909 = vunpack.c.h.b16 %v841
  %v910 = vunpack.c.l.b16 %v842
  %v911 = vunpack.c.h.b16 %v842
  %v912 = vunpack.c.l.b16 %v843
  %v913 = vunpack.c.h.b16 %v843
  %v914 = vunpack.c.l.b16 %v844
  %v915 = vunpack.c.h.b16 %v844
  %v916 = vunpack.c.l.b16 %v845
  %v917 = vunpack.c.h.b16 %v845
  %v918 = vunpack.c.l.b16 %v846
  %v919 = vunpack.c.h.b16 %v846
  %v920 = vunpack.c.l.b16 %v847
  %v921 = vunpack.c.h.b16 %v847
  %v922 = vunpack.c.l.b16 %v848
  %v923 = vunpack.c.h.b16 %v848
  %v924 = vunpack.c.l.b16 %v849
  %v925 = vunpack.c.h.b16 %v849
  %v926 = vunpack.c.l.b16 %v850
  %v927 = vunpack.c.h.b16 %v850
  %v928 = vunpack.c.l.b16 %v851
  %v929 = vunpack.c.h.b16 %v851
  %v930 = vunpack.c.l.b16 %v852
  %v931 = vunpack.c.h.b16 %v852
  %v932 = vunpack.c.l.b16 %v853
  %v933 = vunpack.c.h.b16 %v853
  %v934 = vunpack.c.l.b16 %v854
  %v935 = vunpack.c.h.b16 %v854
  %v936 = vunpack.c.l.b16 %v855
  %v937 = vunpack.c.h.b16 %v855
  %v938 = vunpack.c.l.b16 %v856
  %v939 = vunpack.c.h.b16 %v856
  %v940 = vunpack.c.l.b16 %v857
  %v941 = vunpack.c.h.b16 %v857
  %v942 = vunpack.c.l.b16 %v858
  %v943 = vunpack.c.h.b16 %v858
  %v944 = vunpack.c.l.b16 %v859
  %v945 = vunpack.c.h.b16 %v859
  %v946 = vunpack.c.l.b16 %v860
  %v947 = vunpack.c.h.b16 %v860
  %v948 = vunpack.c.l.b16 %v861
  %v949 = vunpack.c.h.b16 %v861
  %v950 = vunpack.c.l.b16 %v862
  %v951 = vunpack.c.h.b16 %v862
  %v952 = vunpack.c.l.b16 %v863
  %v953 = vunpack.c.h.b16 %v863
  %v954 = vunpack.c.l.b16 %v864
  %v955 = vunpack.c.h.b16 %v864
  %v956 = vunpack.c.l.b16 %v865
  %v957 = vunpack.c.h.b16 %v865
  %v958 = vunpack.c.l.b16 %v866
  %v959 = vunpack.c.h.b16 %v866
  %v960 = vunpack.c.l.b16 %v867
  %v961 = vunpack.c.h.b16 %v867
  %v962 = vunpack.c.l.b16 %v868
  %v963 = vunpack.c.h.b16 %v868
  %v964 = vunpack.c.l.b16 %v869
  %v965 = vunpack.c.h.b16 %v869
  %v966 = vpack.c.b16 %v902, %v902
  %v967 = vpack.c.b16 %v903, %v903
  %v968 = vpack.c.b16 %v904, %v904
  %v969 = vpack.c.b16 %v905, %v905
  %v970 = vpack.c.b16 %v906, %v906
  %v971 = vpack.c.b16 %v907, %v907
  %v972 = vpack.c.b16 %v908, %v908
  %v973 = vpack.c.b16 %v909, %v909
  %v974 = vpack.c.b16 %v910, %v910
  %v975 = vpack.c.b16 %v911, %v911
  %v976 = vpack.c.b16 %v912, %v912
  %v977 = vpack.c.b16 %v913, %v913
  %v978 = vpack.c.b16 %v914, %v914
  %v979 = vpack.c.b16 %v915, %v915
  %v980 = vpack.c.b16 %v916, %v916
  %v981 = vpack.c.b16 %v917, %v917
  %v982 = vpack.c.b16 %v918, %v918
  %v983 = vpack.c.b16 %v919, %v919
  %v984 = vpack.c.b16 %v920, %v920
  %v985 = vpack.c.b16 %v921, %v921
  %v986 = vpack.c.b16 %v922, %v922
  %v987 = vpack.c.b16 %v923, %v923
  %v988 = vpack.c.b16 %v924, %v924
  %v989 = vpack.c.b16 %v925, %v925
  %v990 = vpack.c.b16 %v926, %v926
  %v991 = vpack.c.b16 %v927, %v927
  %v992 = vpack.c.b16 %v928, %v928
  %v993 = vpack.c.b16 %v929, %v929
  %v994 = vpack.c.b16 %v930, %v930
  %v995 = vpack.c.b16 %v931, %v931
  %v996 = vpack.c.b16 %v932, %v932
  %v997 = vpack.c.b16 %v933, %v933
  %v998 = vpack.c.b16 %v934, %v934
  %v999 = vpack.c.b16 %v935, %v935
  %v1000 = vpack.c.b16 %v936, %v936
  %v1001 = vpack.c.b16 %v937, %v937
  %v1002 = vpack.c.b16 %v938, %v938
  %v1003 = vpack.c.b16 %v939, %v939
  %v1004 = vpack.c.b16 %v940, %v940
  %v1005 = vpack.c.b16 %v941, %v941
  %v1006 = vpack.c.b16 %v942, %v942
  %v1007 = vpack.c.b16 %v943, %v943
  %v1008 = vpack.c.b16 %v944, %v944
  %v1009 = vpack.c.b16 %v945, %v945
  %v1010 = vpack.c.b16 %v946, %v946
  %v1011 = vpack.c.b16 %v947, %v947
  %v1012 = vpack.c.b16 %v948, %v948
  %v1013 = vpack.c.b16 %v949, %v949
  %v1014 = vpack.c.b16 %v950, %v950
  %v1015 = vpack.c.b16 %v951, %v951
  %v1016 = vpack.c.b16 %v952, %v952
  %v1017 = vpack.c.b16 %v953, %v953
  %v1018 = vpack.c.b16 %v954, %v954
  %v1019 = vpack.c.b16 %v955, %v955
  %v1020 = vpack.c.b16 %v956, %v956
  %v1021 = vpack.c.b16 %v957, %v957
  %v1022 = vpack.c.b16 %v958, %v958
  %v1023 = vpack.c.b16 %v959, %v959
  %v1024 = vpack.c.b16 %v960, %v960
  %v1025 = vpack.c.b16 %v961, %v961
  %v1026 = vpack.c.b16 %v962, %v962
  %v1027 = vpack.c.b16 %v963, %v963
  %v1028 = vpack.c.b16 %v964, %v964
  %v1029 = vpack.c.b16 %v965, %v965
  %1094 = vst [vmem:[%s2] sm:$0xf] %v966
  %1095 = vst [vmem:[%s2 + $0x4] sm:$0xf] %v967
  %1096 = vst [vmem:[%s2 + $0x8] sm:$0xf] %v968
  %1097 = vst [vmem:[%s2 + $0xc] sm:$0xf] %v969
  %1098 = vst [vmem:[%s2 + $0x10] sm:$0xf] %v970
  %1099 = vst [vmem:[%s2 + $0x14] sm:$0xf] %v971
  %1100 = vst [vmem:[%s2 + $0x18] sm:$0xf] %v972
  %1101 = vst [vmem:[%s2 + $0x1c] sm:$0xf] %v973
  %1102 = vst [vmem:[%s2 + $0x20] sm:$0xf] %v974
  %1103 = vst [vmem:[%s2 + $0x24] sm:$0xf] %v975
  %1104 = vst [vmem:[%s2 + $0x28] sm:$0xf] %v976
  %1105 = vst [vmem:[%s2 + $0x2c] sm:$0xf] %v977
  %1106 = vst [vmem:[%s2 + $0x30] sm:$0xf] %v978
  %1107 = vst [vmem:[%s2 + $0x34] sm:$0xf] %v979
  %1108 = vst [vmem:[%s2 + $0x38] sm:$0xf] %v980
  %1109 = vst [vmem:[%s2 + $0x3c] sm:$0xf] %v981
  %1110 = vst [vmem:[%s2 + $0x40] sm:$0xf] %v982
  %1111 = vst [vmem:[%s2 + $0x44] sm:$0xf] %v983
  %1112 = vst [vmem:[%s2 + $0x48] sm:$0xf] %v984
  %1113 = vst [vmem:[%s2 + $0x4c] sm:$0xf] %v985
  %1114 = vst [vmem:[%s2 + $0x50] sm:$0xf] %v986
  %1115 = vst [vmem:[%s2 + $0x54] sm:$0xf] %v987
  %1116 = vst [vmem:[%s2 + $0x58] sm:$0xf] %v988
  %1117 = vst [vmem:[%s2 + $0x5c] sm:$0xf] %v989
  %1118 = vst [vmem:[%s2 + $0x60] sm:$0xf] %v990
  %1119 = vst [vmem:[%s2 + $0x64] sm:$0xf] %v991
  %1120 = vst [vmem:[%s2 + $0x68] sm:$0xf] %v992
  %1121 = vst [vmem:[%s2 + $0x6c] sm:$0xf] %v993
  %1122 = vst [vmem:[%s2 + $0x70] sm:$0xf] %v994
  %1123 = vst [vmem:[%s2 + $0x74] sm:$0xf] %v995
  %1124 = vst [vmem:[%s2 + $0x78] sm:$0xf] %v996
  %1125 = vst [vmem:[%s2 + $0x7c] sm:$0xf] %v997
  %1126 = vst [vmem:[%s2 + $0x80] sm:$0xf] %v998
  %1127 = vst [vmem:[%s2 + $0x84] sm:$0xf] %v999
  %1128 = vst [vmem:[%s2 + $0x88] sm:$0xf] %v1000
  %1129 = vst [vmem:[%s2 + $0x8c] sm:$0xf] %v1001
  %1130 = vst [vmem:[%s2 + $0x90] sm:$0xf] %v1002
  %1131 = vst [vmem:[%s2 + $0x94] sm:$0xf] %v1003
  %1132 = vst [vmem:[%s2 + $0x98] sm:$0xf] %v1004
  %1133 = vst [vmem:[%s2 + $0x9c] sm:$0xf] %v1005
  %1134 = vst [vmem:[%s2 + $0xa0] sm:$0xf] %v1006
  %1135 = vst [vmem:[%s2 + $0xa4] sm:$0xf] %v1007
  %1136 = vst [vmem:[%s2 + $0xa8] sm:$0xf] %v1008
  %1137 = vst [vmem:[%s2 + $0xac] sm:$0xf] %v1009
  %1138 = vst [vmem:[%s2 + $0xb0] sm:$0xf] %v1010
  %1139 = vst [vmem:[%s2 + $0xb4] sm:$0xf] %v1011
  %1140 = vst [vmem:[%s2 + $0xb8] sm:$0xf] %v1012
  %1141 = vst [vmem:[%s2 + $0xbc] sm:$0xf] %v1013
  %1142 = vst [vmem:[%s2 + $0xc0] sm:$0xf] %v1014
  %1143 = vst [vmem:[%s2 + $0xc4] sm:$0xf] %v1015
  %1144 = vst [vmem:[%s2 + $0xc8] sm:$0xf] %v1016
  %1145 = vst [vmem:[%s2 + $0xcc] sm:$0xf] %v1017
  %1146 = vst [vmem:[%s2 + $0xd0] sm:$0xf] %v1018
  %1147 = vst [vmem:[%s2 + $0xd4] sm:$0xf] %v1019
  %1148 = vst [vmem:[%s2 + $0xd8] sm:$0xf] %v1020
  %1149 = vst [vmem:[%s2 + $0xdc] sm:$0xf] %v1021
  %1150 = vst [vmem:[%s2 + $0xe0] sm:$0xf] %v1022
  %1151 = vst [vmem:[%s2 + $0xe4] sm:$0xf] %v1023
  %1152 = vst [vmem:[%s2 + $0xe8] sm:$0xf] %v1024
  %1153 = vst [vmem:[%s2 + $0xec] sm:$0xf] %v1025
  %1154 = vst [vmem:[%s2 + $0xf0] sm:$0xf] %v1026
  %1155 = vst [vmem:[%s2 + $0xf4] sm:$0xf] %v1027
  %1156 = vst [vmem:[%s2 + $0xf8] sm:$0xf] %v1028
  %1157 = vst [vmem:[%s2 + $0xfc] sm:$0xf] %v1029
  // Predicated region
  $region10: #{discriminator_forward.6} parent=0 // pred_check
    _
  $region11: #{discriminator_forward.6} parent=0 // pred_check_branch
    %1159 = sbr.rel (0) target = $region13
  $region12: #{discriminator_forward.6} parent=0 // pred_region
    _
  $region13: #{discriminator_forward.6} parent=0 // pred_fallthru
    _
  // Predicated region
  $region14: #{discriminator_forward.6} parent=0 // pred_check
    _
  $region15: #{discriminator_forward.6} parent=0 // pred_check_branch
    %1161 = sbr.rel (0) target = $region17
  $region16: #{discriminator_forward.6} parent=0 // pred_region
    _
  $region17: #{discriminator_forward.6} parent=0 // pred_fallthru
    _

// kernel: discriminator_forward.8
$region0: #{discriminator_forward.8}
  #allocation0 [shape = 'u32[]', space=smem, size = 0x4, offset = 0x4, fixed_abs, tag = 'smem constant byte address 0x4 - core index']
  #allocation1 [shape = 'u32[144,128]{1,0:T(1,128)}', space=vmem, size = 0x12000, scoped, tag = 'internal scratch']
  %s0 = inlined_call_operand.vmem [shape: f32[128,128], index: 0, kind: input, shape index: {}]
  %s1 = inlined_call_operand.vmem [shape: f32[1,128], index: 1, kind: input, shape index: {}]
  %s2 = inlined_call_operand.vmem [shape: f32[1,128], index: 2, kind: input, shape index: {}]
  %s3 = inlined_call_operand.vmem [shape: bf16[128,128], index: 3, kind: output, shape index: {}]
  %s4 = sld [smem:[#allocation0]]
  $region22: #{discriminator_forward.8} parent=0
    _
  %s6 = ssub.s32 1, %s4
  %s7 = scalar_select 0, %s6, %s4
  // Predicated region
  $region2: #{discriminator_forward.8} parent=0 // pred_check
    _
  $region3: #{discriminator_forward.8} parent=0 // pred_check_branch
    %9 = sbr.rel (0) target = $region5
  $region4: #{discriminator_forward.8} parent=0 // pred_region
    _
  $region5: #{discriminator_forward.8} parent=0 // pred_fallthru
    _
  // Predicated region
  $region6: #{discriminator_forward.8} parent=0 // pred_check
    _
  $region7: #{discriminator_forward.8} parent=0 // pred_check_branch
    %11 = sbr.rel (0) target = $region9
  $region8: #{discriminator_forward.8} parent=0 // pred_region
    _
  $region9: #{discriminator_forward.8} parent=0 // pred_fallthru
    _
  // Predicated region
  $region10: #{discriminator_forward.8} parent=0 // pred_check
    _
  $region11: #{discriminator_forward.8} parent=0 // pred_check_branch
    %13 = sbr.rel (0) target = $region13
  $region12: #{discriminator_forward.8} parent=0 // pred_region
    _
  $region13: #{discriminator_forward.8} parent=0 // pred_fallthru
    _
  %v14 = vld [vmem:[%s0] sm:$0xff]
  %v15 = vld [vmem:[%s0 + $0x8] sm:$0xff]
  %v16 = vld [vmem:[%s0 + $0x10] sm:$0xff]
  %v17 = vld [vmem:[%s0 + $0x18] sm:$0xff]
  %v18 = vld [vmem:[%s0 + $0x20] sm:$0xff]
  %v19 = vld [vmem:[%s0 + $0x28] sm:$0xff]
  %v20 = vld [vmem:[%s0 + $0x30] sm:$0xff]
  %v21 = vld [vmem:[%s0 + $0x38] sm:$0xff]
  %v22 = vld [vmem:[%s0 + $0x40] sm:$0xff]
  %v23 = vld [vmem:[%s0 + $0x48] sm:$0xff]
  %v24 = vld [vmem:[%s0 + $0x50] sm:$0xff]
  %v25 = vld [vmem:[%s0 + $0x58] sm:$0xff]
  %v26 = vld [vmem:[%s0 + $0x60] sm:$0xff]
  %v27 = vld [vmem:[%s0 + $0x68] sm:$0xff]
  %v28 = vld [vmem:[%s0 + $0x70] sm:$0xff]
  %v29 = vld [vmem:[%s0 + $0x78] sm:$0xff]
  %v30 = vld [vmem:[%s1] sm:$0x1]
  %v32 = vlaneseq
  %v33 = vshrl.u32 %v32, 7
  %v34 = vsub.s32 0, %v33
  %v35 = vrot.slane %v30, %v34
  %v37 = vmul.f32 %v14, %v35
  %v38 = vmul.f32 %v15, %v35
  %v39 = vmul.f32 %v16, %v35
  %v40 = vmul.f32 %v17, %v35
  %v41 = vmul.f32 %v18, %v35
  %v42 = vmul.f32 %v19, %v35
  %v43 = vmul.f32 %v20, %v35
  %v44 = vmul.f32 %v21, %v35
  %v45 = vmul.f32 %v22, %v35
  %v46 = vmul.f32 %v23, %v35
  %v47 = vmul.f32 %v24, %v35
  %v48 = vmul.f32 %v25, %v35
  %v49 = vmul.f32 %v26, %v35
  %v50 = vmul.f32 %v27, %v35
  %v51 = vmul.f32 %v28, %v35
  %v52 = vmul.f32 %v29, %v35
  %v53 = vld [vmem:[%s2] sm:$0x1]
  %v55 = vlaneseq
  %v56 = vshrl.u32 %v55, 7
  %v57 = vsub.s32 0, %v56
  %v58 = vrot.slane %v53, %v57
  %v60 = vadd.f32 %v37, %v58
  %v61 = vadd.f32 %v38, %v58
  %v62 = vadd.f32 %v39, %v58
  %v63 = vadd.f32 %v40, %v58
  %v64 = vadd.f32 %v41, %v58
  %v65 = vadd.f32 %v42, %v58
  %v66 = vadd.f32 %v43, %v58
  %v67 = vadd.f32 %v44, %v58
  %v68 = vadd.f32 %v45, %v58
  %v69 = vadd.f32 %v46, %v58
  %v70 = vadd.f32 %v47, %v58
  %v71 = vadd.f32 %v48, %v58
  %v72 = vadd.f32 %v49, %v58
  %v73 = vadd.f32 %v50, %v58
  %v74 = vadd.f32 %v51, %v58
  %v75 = vadd.f32 %v52, %v58
  %vm76 = vcmp.gt.f32.partialorder %v60, 0.0
  %vm77 = vcmp.gt.f32.partialorder %v61, 0.0
  %vm78 = vcmp.gt.f32.partialorder %v62, 0.0
  %vm79 = vcmp.gt.f32.partialorder %v63, 0.0
  %vm80 = vcmp.gt.f32.partialorder %v64, 0.0
  %vm81 = vcmp.gt.f32.partialorder %v65, 0.0
  %vm82 = vcmp.gt.f32.partialorder %v66, 0.0
  %vm83 = vcmp.gt.f32.partialorder %v67, 0.0
  %vm84 = vcmp.gt.f32.partialorder %v68, 0.0
  %vm85 = vcmp.gt.f32.partialorder %v69, 0.0
  %vm86 = vcmp.gt.f32.partialorder %v70, 0.0
  %vm87 = vcmp.gt.f32.partialorder %v71, 0.0
  %vm88 = vcmp.gt.f32.partialorder %v72, 0.0
  %vm89 = vcmp.gt.f32.partialorder %v73, 0.0
  %vm90 = vcmp.gt.f32.partialorder %v74, 0.0
  %vm91 = vcmp.gt.f32.partialorder %v75, 0.0
  %v92 = vmul.f32 %v60, 0.2
  %v93 = vmul.f32 %v61, 0.2
  %v94 = vmul.f32 %v62, 0.2
  %v95 = vmul.f32 %v63, 0.2
  %v96 = vmul.f32 %v64, 0.2
  %v97 = vmul.f32 %v65, 0.2
  %v98 = vmul.f32 %v66, 0.2
  %v99 = vmul.f32 %v67, 0.2
  %v100 = vmul.f32 %v68, 0.2
  %v101 = vmul.f32 %v69, 0.2
  %v102 = vmul.f32 %v70, 0.2
  %v103 = vmul.f32 %v71, 0.2
  %v104 = vmul.f32 %v72, 0.2
  %v105 = vmul.f32 %v73, 0.2
  %v106 = vmul.f32 %v74, 0.2
  %v107 = vmul.f32 %v75, 0.2
  %v108 = vsel %vm76, %v60, %v92
  %v109 = vsel %vm77, %v61, %v93
  %v110 = vsel %vm78, %v62, %v94
  %v111 = vsel %vm79, %v63, %v95
  %v112 = vsel %vm80, %v64, %v96
  %v113 = vsel %vm81, %v65, %v97
  %v114 = vsel %vm82, %v66, %v98
  %v115 = vsel %vm83, %v67, %v99
  %v116 = vsel %vm84, %v68, %v100
  %v117 = vsel %vm85, %v69, %v101
  %v118 = vsel %vm86, %v70, %v102
  %v119 = vsel %vm87, %v71, %v103
  %v120 = vsel %vm88, %v72, %v104
  %v121 = vsel %vm89, %v73, %v105
  %v122 = vsel %vm90, %v74, %v106
  %v123 = vsel %vm91, %v75, %v107
  %v124 = vpack.c.bf16 %v109, %v108
  %v125 = vpack.c.bf16 %v111, %v110
  %v126 = vpack.c.bf16 %v113, %v112
  %v127 = vpack.c.bf16 %v115, %v114
  %v128 = vpack.c.bf16 %v117, %v116
  %v129 = vpack.c.bf16 %v119, %v118
  %v130 = vpack.c.bf16 %v121, %v120
  %v131 = vpack.c.bf16 %v123, %v122
  %v140 = vunpack.c.l.b16 %v124
  %v141 = vunpack.c.h.b16 %v124
  %v142 = vunpack.c.l.b16 %v125
  %v143 = vunpack.c.h.b16 %v125
  %v144 = vunpack.c.l.b16 %v126
  %v145 = vunpack.c.h.b16 %v126
  %v146 = vunpack.c.l.b16 %v127
  %v147 = vunpack.c.h.b16 %v127
  %v148 = vunpack.c.l.b16 %v128
  %v149 = vunpack.c.h.b16 %v128
  %v150 = vunpack.c.l.b16 %v129
  %v151 = vunpack.c.h.b16 %v129
  %v152 = vunpack.c.l.b16 %v130
  %v153 = vunpack.c.h.b16 %v130
  %v154 = vunpack.c.l.b16 %v131
  %v155 = vunpack.c.h.b16 %v131
  %v156 = vpack.c.b16 %v140, %v140
  %v157 = vpack.c.b16 %v141, %v141
  %v158 = vpack.c.b16 %v142, %v142
  %v159 = vpack.c.b16 %v143, %v143
  %v160 = vpack.c.b16 %v144, %v144
  %v161 = vpack.c.b16 %v145, %v145
  %v162 = vpack.c.b16 %v146, %v146
  %v163 = vpack.c.b16 %v147, %v147
  %v164 = vpack.c.b16 %v148, %v148
  %v165 = vpack.c.b16 %v149, %v149
  %v166 = vpack.c.b16 %v150, %v150
  %v167 = vpack.c.b16 %v151, %v151
  %v168 = vpack.c.b16 %v152, %v152
  %v169 = vpack.c.b16 %v153, %v153
  %v170 = vpack.c.b16 %v154, %v154
  %v171 = vpack.c.b16 %v155, %v155
  %188 = vst [vmem:[%s3] sm:$0xf] %v156
  %189 = vst [vmem:[%s3 + $0x4] sm:$0xf] %v157
  %190 = vst [vmem:[%s3 + $0x8] sm:$0xf] %v158
  %191 = vst [vmem:[%s3 + $0xc] sm:$0xf] %v159
  %192 = vst [vmem:[%s3 + $0x10] sm:$0xf] %v160
  %193 = vst [vmem:[%s3 + $0x14] sm:$0xf] %v161
  %194 = vst [vmem:[%s3 + $0x18] sm:$0xf] %v162
  %195 = vst [vmem:[%s3 + $0x1c] sm:$0xf] %v163
  %196 = vst [vmem:[%s3 + $0x20] sm:$0xf] %v164
  %197 = vst [vmem:[%s3 + $0x24] sm:$0xf] %v165
  %198 = vst [vmem:[%s3 + $0x28] sm:$0xf] %v166
  %199 = vst [vmem:[%s3 + $0x2c] sm:$0xf] %v167
  %200 = vst [vmem:[%s3 + $0x30] sm:$0xf] %v168
  %201 = vst [vmem:[%s3 + $0x34] sm:$0xf] %v169
  %202 = vst [vmem:[%s3 + $0x38] sm:$0xf] %v170
  %203 = vst [vmem:[%s3 + $0x3c] sm:$0xf] %v171
  // Predicated region
  $region14: #{discriminator_forward.8} parent=0 // pred_check
    _
  $region15: #{discriminator_forward.8} parent=0 // pred_check_branch
    %205 = sbr.rel (0) target = $region17
  $region16: #{discriminator_forward.8} parent=0 // pred_region
    _
  $region17: #{discriminator_forward.8} parent=0 // pred_fallthru
    _
  // Predicated region
  $region18: #{discriminator_forward.8} parent=0 // pred_check
    _
  $region19: #{discriminator_forward.8} parent=0 // pred_check_branch
    %207 = sbr.rel (0) target = $region21
  $region20: #{discriminator_forward.8} parent=0 // pred_region
    _
  $region21: #{discriminator_forward.8} parent=0 // pred_fallthru
    _

// kernel: discriminator_forward.10
$region0: #{discriminator_forward.10}
  #allocation0 [shape = 'u32[]', space=smem, size = 0x4, offset = 0x4, fixed_abs, tag = 'smem constant byte address 0x4 - core index']
  #allocation1 [shape = 'u32[144,128]{1,0:T(1,128)}', space=vmem, size = 0x12000, scoped, tag = 'internal scratch']
  %s0 = inlined_call_operand.vmem [shape: f32[32,128], index: 0, kind: input, shape index: {}]
  %s1 = inlined_call_operand.vmem [shape: f32[1,128], index: 1, kind: input, shape index: {}]
  %s2 = inlined_call_operand.vmem [shape: f32[1,128], index: 2, kind: input, shape index: {}]
  %s3 = inlined_call_operand.vmem [shape: bf16[32,128], index: 3, kind: output, shape index: {}]
  %s4 = sld [smem:[#allocation0]]
  $region22: #{discriminator_forward.10} parent=0
    _
  %s6 = ssub.s32 1, %s4
  %s7 = scalar_select 0, %s6, %s4
  // Predicated region
  $region2: #{discriminator_forward.10} parent=0 // pred_check
    _
  $region3: #{discriminator_forward.10} parent=0 // pred_check_branch
    %9 = sbr.rel (0) target = $region5
  $region4: #{discriminator_forward.10} parent=0 // pred_region
    _
  $region5: #{discriminator_forward.10} parent=0 // pred_fallthru
    _
  // Predicated region
  $region6: #{discriminator_forward.10} parent=0 // pred_check
    _
  $region7: #{discriminator_forward.10} parent=0 // pred_check_branch
    %11 = sbr.rel (0) target = $region9
  $region8: #{discriminator_forward.10} parent=0 // pred_region
    _
  $region9: #{discriminator_forward.10} parent=0 // pred_fallthru
    _
  // Predicated region
  $region10: #{discriminator_forward.10} parent=0 // pred_check
    _
  $region11: #{discriminator_forward.10} parent=0 // pred_check_branch
    %13 = sbr.rel (0) target = $region13
  $region12: #{discriminator_forward.10} parent=0 // pred_region
    _
  $region13: #{discriminator_forward.10} parent=0 // pred_fallthru
    _
  %v14 = vld [vmem:[%s0] sm:$0xff]
  %v15 = vld [vmem:[%s0 + $0x8] sm:$0xff]
  %v16 = vld [vmem:[%s0 + $0x10] sm:$0xff]
  %v17 = vld [vmem:[%s0 + $0x18] sm:$0xff]
  %v18 = vld [vmem:[%s1] sm:$0x1]
  %v20 = vlaneseq
  %v21 = vshrl.u32 %v20, 7
  %v22 = vsub.s32 0, %v21
  %v23 = vrot.slane %v18, %v22
  %v25 = vmul.f32 %v14, %v23
  %v26 = vmul.f32 %v15, %v23
  %v27 = vmul.f32 %v16, %v23
  %v28 = vmul.f32 %v17, %v23
  %v29 = vld [vmem:[%s2] sm:$0x1]
  %v31 = vlaneseq
  %v32 = vshrl.u32 %v31, 7
  %v33 = vsub.s32 0, %v32
  %v34 = vrot.slane %v29, %v33
  %v36 = vadd.f32 %v25, %v34
  %v37 = vadd.f32 %v26, %v34
  %v38 = vadd.f32 %v27, %v34
  %v39 = vadd.f32 %v28, %v34
  %vm40 = vcmp.gt.f32.partialorder %v36, 0.0
  %vm41 = vcmp.gt.f32.partialorder %v37, 0.0
  %vm42 = vcmp.gt.f32.partialorder %v38, 0.0
  %vm43 = vcmp.gt.f32.partialorder %v39, 0.0
  %v44 = vmul.f32 %v36, 0.2
  %v45 = vmul.f32 %v37, 0.2
  %v46 = vmul.f32 %v38, 0.2
  %v47 = vmul.f32 %v39, 0.2
  %v48 = vsel %vm40, %v36, %v44
  %v49 = vsel %vm41, %v37, %v45
  %v50 = vsel %vm42, %v38, %v46
  %v51 = vsel %vm43, %v39, %v47
  %v52 = vpack.c.bf16 %v49, %v48
  %v53 = vpack.c.bf16 %v51, %v50
  %v56 = vunpack.c.l.b16 %v52
  %v57 = vunpack.c.h.b16 %v52
  %v58 = vunpack.c.l.b16 %v53
  %v59 = vunpack.c.h.b16 %v53
  %v60 = vpack.c.b16 %v56, %v56
  %v61 = vpack.c.b16 %v57, %v57
  %v62 = vpack.c.b16 %v58, %v58
  %v63 = vpack.c.b16 %v59, %v59
  %68 = vst [vmem:[%s3] sm:$0xf] %v60
  %69 = vst [vmem:[%s3 + $0x4] sm:$0xf] %v61
  %70 = vst [vmem:[%s3 + $0x8] sm:$0xf] %v62
  %71 = vst [vmem:[%s3 + $0xc] sm:$0xf] %v63
  // Predicated region
  $region14: #{discriminator_forward.10} parent=0 // pred_check
    _
  $region15: #{discriminator_forward.10} parent=0 // pred_check_branch
    %73 = sbr.rel (0) target = $region17
  $region16: #{discriminator_forward.10} parent=0 // pred_region
    _
  $region17: #{discriminator_forward.10} parent=0 // pred_fallthru
    _
  // Predicated region
  $region18: #{discriminator_forward.10} parent=0 // pred_check
    _
  $region19: #{discriminator_forward.10} parent=0 // pred_check_branch
    %75 = sbr.rel (0) target = $region21
  $region20: #{discriminator_forward.10} parent=0 // pred_region
    _
  $region21: #{discriminator_forward.10} parent=0 // pred_fallthru
    _

// kernel: discriminator_forward.9
$region0: #{discriminator_forward.9}
  #allocation0 [shape = 'u32[]', space=smem, size = 0x4, offset = 0x4, fixed_abs, tag = 'smem constant byte address 0x4 - core index']
  #allocation1 [shape = 'u32[144,128]{1,0:T(1,128)}', space=vmem, size = 0x12000, scoped, tag = 'internal scratch']
  %s0 = inlined_call_operand.vmem [shape: bf16[32,256], index: 0, kind: input, shape index: {}]
  %s1 = inlined_call_operand.vmem [shape: bf16[256,128], index: 1, kind: input, shape index: {}]
  %s2 = inlined_call_operand.vmem [shape: f32[32,128], index: 2, kind: output, shape index: {0}]
  %s3 = inlined_call_operand.vmem [shape: f32[1,2,128], index: 3, kind: output, shape index: {1}]
  %4 = xla_tuple %s2, %s3
  %s5 = sld [smem:[#allocation0]]
  $region26: #{discriminator_forward.9} parent=0
    _
  %s7 = ssub.s32 1, %s5
  %s8 = scalar_select 0, %s7, %s5
  // Predicated region
  $region2: #{discriminator_forward.9} parent=0 // pred_check
    _
  $region3: #{discriminator_forward.9} parent=0 // pred_check_branch
    %10 = sbr.rel (0) target = $region5
  $region4: #{discriminator_forward.9} parent=0 // pred_region
    _
  $region5: #{discriminator_forward.9} parent=0 // pred_fallthru
    _
  // Predicated region
  $region6: #{discriminator_forward.9} parent=0 // pred_check
    _
  $region7: #{discriminator_forward.9} parent=0 // pred_check_branch
    %12 = sbr.rel (0) target = $region9
  $region8: #{discriminator_forward.9} parent=0 // pred_region
    _
  $region9: #{discriminator_forward.9} parent=0 // pred_fallthru
    _
  %v14 = vld [vmem:[%s0] sm:$0xff]
  %v15 = vld [vmem:[%s0 + $0x8] sm:$0xff]
  %v16 = vld [vmem:[%s0 + $0x10] sm:$0xff]
  %v17 = vld [vmem:[%s0 + $0x18] sm:$0xff]
  %v18 = vld [vmem:[%s1] sm:$0xf]
  %v19 = vld [vmem:[%s1 + $0x4] sm:$0xf]
  %v20 = vld [vmem:[%s1 + $0x8] sm:$0xf]
  %v21 = vld [vmem:[%s1 + $0xc] sm:$0xf]
  %v22 = vld [vmem:[%s1 + $0x10] sm:$0xf]
  %v23 = vld [vmem:[%s1 + $0x14] sm:$0xf]
  %v24 = vld [vmem:[%s1 + $0x18] sm:$0xf]
  %v25 = vld [vmem:[%s1 + $0x1c] sm:$0xf]
  %v26 = vld [vmem:[%s1 + $0x20] sm:$0xf]
  %v27 = vld [vmem:[%s1 + $0x24] sm:$0xf]
  %v28 = vld [vmem:[%s1 + $0x28] sm:$0xf]
  %v29 = vld [vmem:[%s1 + $0x2c] sm:$0xf]
  %v30 = vld [vmem:[%s1 + $0x30] sm:$0xf]
  %v31 = vld [vmem:[%s1 + $0x34] sm:$0xf]
  %v32 = vld [vmem:[%s1 + $0x38] sm:$0xf]
  %v33 = vld [vmem:[%s1 + $0x3c] sm:$0xf]
  %v34 = vld [vmem:[%s1 + $0x40] sm:$0xf]
  %v35 = vld [vmem:[%s1 + $0x44] sm:$0xf]
  %v36 = vld [vmem:[%s1 + $0x48] sm:$0xf]
  %v37 = vld [vmem:[%s1 + $0x4c] sm:$0xf]
  %v38 = vld [vmem:[%s1 + $0x50] sm:$0xf]
  %v39 = vld [vmem:[%s1 + $0x54] sm:$0xf]
  %v40 = vld [vmem:[%s1 + $0x58] sm:$0xf]
  %v41 = vld [vmem:[%s1 + $0x5c] sm:$0xf]
  %v42 = vld [vmem:[%s1 + $0x60] sm:$0xf]
  %v43 = vld [vmem:[%s1 + $0x64] sm:$0xf]
  %v44 = vld [vmem:[%s1 + $0x68] sm:$0xf]
  %v45 = vld [vmem:[%s1 + $0x6c] sm:$0xf]
  %v46 = vld [vmem:[%s1 + $0x70] sm:$0xf]
  %v47 = vld [vmem:[%s1 + $0x74] sm:$0xf]
  %v48 = vld [vmem:[%s1 + $0x78] sm:$0xf]
  %v49 = vld [vmem:[%s1 + $0x7c] sm:$0xf]
  %v54 = vunpack.c.l.b16 %v14
  %v55 = vunpack.c.h.b16 %v14
  %v56 = vunpack.c.l.b16 %v15
  %v57 = vunpack.c.h.b16 %v15
  %v58 = vunpack.c.l.b16 %v16
  %v59 = vunpack.c.h.b16 %v16
  %v60 = vunpack.c.l.b16 %v17
  %v61 = vunpack.c.h.b16 %v17
  %v62 = vpack.c.b16 %v56, %v54
  %v63 = vpack.c.b16 %v57, %v55
  %v64 = vpack.c.b16 %v60, %v58
  %v65 = vpack.c.b16 %v61, %v59
  %v102 = vunpack.c.l.b16 %v18
  %v103 = vunpack.c.l.b16 %v19
  %v104 = vunpack.c.l.b16 %v20
  %v105 = vunpack.c.l.b16 %v21
  %v106 = vunpack.c.l.b16 %v22
  %v107 = vunpack.c.l.b16 %v23
  %v108 = vunpack.c.l.b16 %v24
  %v109 = vunpack.c.l.b16 %v25
  %v110 = vunpack.c.l.b16 %v26
  %v111 = vunpack.c.l.b16 %v27
  %v112 = vunpack.c.l.b16 %v28
  %v113 = vunpack.c.l.b16 %v29
  %v114 = vunpack.c.l.b16 %v30
  %v115 = vunpack.c.l.b16 %v31
  %v116 = vunpack.c.l.b16 %v32
  %v117 = vunpack.c.l.b16 %v33
  %v118 = vunpack.c.l.b16 %v34
  %v119 = vunpack.c.l.b16 %v35
  %v120 = vunpack.c.l.b16 %v36
  %v121 = vunpack.c.l.b16 %v37
  %v122 = vunpack.c.l.b16 %v38
  %v123 = vunpack.c.l.b16 %v39
  %v124 = vunpack.c.l.b16 %v40
  %v125 = vunpack.c.l.b16 %v41
  %v126 = vunpack.c.l.b16 %v42
  %v127 = vunpack.c.l.b16 %v43
  %v128 = vunpack.c.l.b16 %v44
  %v129 = vunpack.c.l.b16 %v45
  %v130 = vunpack.c.l.b16 %v46
  %v131 = vunpack.c.l.b16 %v47
  %v132 = vunpack.c.l.b16 %v48
  %v133 = vunpack.c.l.b16 %v49
  %v134 = vpack.c.b16 %v103, %v102
  %v135 = vpack.c.b16 %v105, %v104
  %v136 = vpack.c.b16 %v107, %v106
  %v137 = vpack.c.b16 %v109, %v108
  %v138 = vpack.c.b16 %v111, %v110
  %v139 = vpack.c.b16 %v113, %v112
  %v140 = vpack.c.b16 %v115, %v114
  %v141 = vpack.c.b16 %v117, %v116
  %v142 = vpack.c.b16 %v119, %v118
  %v143 = vpack.c.b16 %v121, %v120
  %v144 = vpack.c.b16 %v123, %v122
  %v145 = vpack.c.b16 %v125, %v124
  %v146 = vpack.c.b16 %v127, %v126
  %v147 = vpack.c.b16 %v129, %v128
  %v148 = vpack.c.b16 %v131, %v130
  %v149 = vpack.c.b16 %v133, %v132
  %166 = vmatprep.subr.bf16.mxu0 0
  %167 = vmatpush1.bf16.msra.mxu0 %v141
  %168 = vmatprep.subr.bf16.mxu0 0
  %169 = vmatpush1.bf16.msra.mxu0 %v140
  %170 = vmatprep.subr.bf16.mxu0 0
  %171 = vmatpush1.bf16.msra.mxu0 %v139
  %172 = vmatprep.subr.bf16.mxu0 0
  %173 = vmatpush1.bf16.msra.mxu0 %v138
  %174 = vmatprep.subr.bf16.mxu0 0
  %175 = vmatpush1.bf16.msra.mxu0 %v137
  %176 = vmatprep.subr.bf16.mxu0 0
  %177 = vmatpush1.bf16.msra.mxu0 %v136
  %178 = vmatprep.subr.bf16.mxu0 0
  %179 = vmatpush1.bf16.msra.mxu0 %v135
  %180 = vmatprep.subr.bf16.mxu0 0
  %181 = vmatpush1.bf16.msra.mxu0 %v134
  %182 = vmatprep.subr.bf16.mxu0 0
  %183 = vmatpush2.bf16.msra.mxu0 %v149
  %184 = vmatprep.subr.bf16.mxu0 0
  %185 = vmatpush2.bf16.msra.mxu0 %v148
  %186 = vmatprep.subr.bf16.mxu0 0
  %187 = vmatpush2.bf16.msra.mxu0 %v147
  %188 = vmatprep.subr.bf16.mxu0 0
  %189 = vmatpush2.bf16.msra.mxu0 %v146
  %190 = vmatprep.subr.bf16.mxu0 0
  %191 = vmatpush2.bf16.msra.mxu0 %v145
  %192 = vmatprep.subr.bf16.mxu0 0
  %193 = vmatpush2.bf16.msra.mxu0 %v144
  %194 = vmatprep.subr.bf16.mxu0 0
  %195 = vmatpush2.bf16.msra.mxu0 %v143
  %196 = vmatprep.subr.bf16.mxu0 0
  %197 = vmatpush2.bf16.msra.mxu0 %v142
  %198 = vmatprep.mubr.bf16.mxu0 %v63
  %199 = vmatmul.mubr.bf16.gmra.mxu0 %v62
  %v200 = vpop.f32.mrf.mxu0
  %v201 = vadd.f32 0.0, %v200
  %v202 = vpop.f32.mrf.mxu0
  %v203 = vpop.f32.mrf.mxu0
  %v204 = vadd.f32 0.0, %v203
  %v205 = vpop.f32.mrf.mxu0
  %206 = vmatprep.mubr.bf16.mxu0 %v65
  %207 = vmatmul.mubr.bf16.gmra.mxu0 %v64
  %v208 = vpop.f32.mrf.mxu0
  %v209 = vadd.f32 0.0, %v208
  %v210 = vpop.f32.mrf.mxu0
  %v211 = vpop.f32.mrf.mxu0
  %v212 = vadd.f32 0.0, %v211
  %v213 = vpop.f32.mrf.mxu0
  %214 = vdwg.mxu0
  %215 = vst [vmem:[%s2] sm:$0xff] %v201
  %216 = vst [vmem:[%s2 + $0x8] sm:$0xff] %v204
  %217 = vst [vmem:[%s2 + $0x10] sm:$0xff] %v209
  %218 = vst [vmem:[%s2 + $0x18] sm:$0xff] %v212
  %v219 = vadd.f32 %v201, %v204
  %v220 = vadd.f32 %v219, %v209
  %v221 = vadd.f32 %v220, %v212
  %v222 = vrot.slane %v221, 4
  %v223 = vadd.f32 %v221, %v222
  %v224 = vrot.slane %v223, 2
  %v225 = vadd.f32 %v223, %v224
  %v226 = vrot.slane %v225, 1
  %v227 = vadd.f32 %v225, %v226
  %v228 = vmul.f32 %v201, %v201
  %v229 = vmul.f32 %v204, %v204
  %v230 = vmul.f32 %v209, %v209
  %v231 = vmul.f32 %v212, %v212
  %v232 = vadd.f32 %v228, %v229
  %v233 = vadd.f32 %v232, %v230
  %v234 = vadd.f32 %v233, %v231
  %v235 = vrot.slane %v234, 4
  %v236 = vadd.f32 %v234, %v235
  %v237 = vrot.slane %v236, 2
  %v238 = vadd.f32 %v236, %v237
  %v239 = vrot.slane %v238, 1
  %v240 = vadd.f32 %v238, %v239
  %vm241 = vcmask 1040384
  %v242 = vsel %vm241, %v227, %v240
  %243 = vst [vmem:[%s3] sm:$0x3] %v242
  // Predicated region
  $region10: #{discriminator_forward.9} parent=0 // pred_check
    _
  $region11: #{discriminator_forward.9} parent=0 // pred_check_branch
    %245 = sbr.rel (0) target = $region13
  $region12: #{discriminator_forward.9} parent=0 // pred_region
    _
  $region13: #{discriminator_forward.9} parent=0 // pred_fallthru
    _
  // Predicated region
  $region14: #{discriminator_forward.9} parent=0 // pred_check
    _
  $region15: #{discriminator_forward.9} parent=0 // pred_check_branch
    %247 = sbr.rel (0) target = $region17
  $region16: #{discriminator_forward.9} parent=0 // pred_region
    _
  $region17: #{discriminator_forward.9} parent=0 // pred_fallthru
    _
  // Predicated region
  $region18: #{discriminator_forward.9} parent=0 // pred_check
    _
  $region19: #{discriminator_forward.9} parent=0 // pred_check_branch
    %249 = sbr.rel (0) target = $region21
  $region20: #{discriminator_forward.9} parent=0 // pred_region
    _
  $region21: #{discriminator_forward.9} parent=0 // pred_fallthru
    _
  // Predicated region
  $region22: #{discriminator_forward.9} parent=0 // pred_check
    _
  $region23: #{discriminator_forward.9} parent=0 // pred_check_branch
    %251 = sbr.rel (0) target = $region25
  $region24: #{discriminator_forward.9} parent=0 // pred_region
    _
  $region25: #{discriminator_forward.9} parent=0 // pred_fallthru
    _

// kernel: discriminator_forward.11
$region0: #{discriminator_forward.11}
  #allocation0 [shape = 'u32[]', space=smem, size = 0x4, offset = 0x4, fixed_abs, tag = 'smem constant byte address 0x4 - core index']
  #allocation1 [shape = 'u32[144,128]{1,0:T(1,128)}', space=vmem, size = 0x12000, scoped, tag = 'internal scratch']
  %s0 = inlined_call_operand.vmem [shape: bf16[2,512], index: 0, kind: input, shape index: {}]
  %s1 = inlined_call_operand.vmem [shape: bf16[512,128], index: 1, kind: input, shape index: {}]
  %s2 = inlined_call_operand.vmem [shape: f32[2,128], index: 2, kind: output, shape index: {}]
  %s3 = sld [smem:[#allocation0]]
  $region18: #{discriminator_forward.11} parent=0
    _
  %s5 = ssub.s32 1, %s3
  %s6 = scalar_select 0, %s5, %s3
  // Predicated region
  $region2: #{discriminator_forward.11} parent=0 // pred_check
    _
  $region3: #{discriminator_forward.11} parent=0 // pred_check_branch
    %8 = sbr.rel (0) target = $region5
  $region4: #{discriminator_forward.11} parent=0 // pred_region
    _
  $region5: #{discriminator_forward.11} parent=0 // pred_fallthru
    _
  // Predicated region
  $region6: #{discriminator_forward.11} parent=0 // pred_check
    _
  $region7: #{discriminator_forward.11} parent=0 // pred_check_branch
    %10 = sbr.rel (0) target = $region9
  $region8: #{discriminator_forward.11} parent=0 // pred_region
    _
  $region9: #{discriminator_forward.11} parent=0 // pred_fallthru
    _
  %v12 = vld [vmem:[%s0] sm:$0xf]
  %v13 = vld [vmem:[%s1] sm:$0xf]
  %v14 = vld [vmem:[%s1 + $0x4] sm:$0xf]
  %v15 = vld [vmem:[%s1 + $0x8] sm:$0xf]
  %v16 = vld [vmem:[%s1 + $0xc] sm:$0xf]
  %v17 = vld [vmem:[%s1 + $0x10] sm:$0xf]
  %v18 = vld [vmem:[%s1 + $0x14] sm:$0xf]
  %v19 = vld [vmem:[%s1 + $0x18] sm:$0xf]
  %v20 = vld [vmem:[%s1 + $0x1c] sm:$0xf]
  %v21 = vld [vmem:[%s1 + $0x20] sm:$0xf]
  %v22 = vld [vmem:[%s1 + $0x24] sm:$0xf]
  %v23 = vld [vmem:[%s1 + $0x28] sm:$0xf]
  %v24 = vld [vmem:[%s1 + $0x2c] sm:$0xf]
  %v25 = vld [vmem:[%s1 + $0x30] sm:$0xf]
  %v26 = vld [vmem:[%s1 + $0x34] sm:$0xf]
  %v27 = vld [vmem:[%s1 + $0x38] sm:$0xf]
  %v28 = vld [vmem:[%s1 + $0x3c] sm:$0xf]
  %v29 = vld [vmem:[%s1 + $0x40] sm:$0xf]
  %v30 = vld [vmem:[%s1 + $0x44] sm:$0xf]
  %v31 = vld [vmem:[%s1 + $0x48] sm:$0xf]
  %v32 = vld [vmem:[%s1 + $0x4c] sm:$0xf]
  %v33 = vld [vmem:[%s1 + $0x50] sm:$0xf]
  %v34 = vld [vmem:[%s1 + $0x54] sm:$0xf]
  %v35 = vld [vmem:[%s1 + $0x58] sm:$0xf]
  %v36 = vld [vmem:[%s1 + $0x5c] sm:$0xf]
  %v37 = vld [vmem:[%s1 + $0x60] sm:$0xf]
  %v38 = vld [vmem:[%s1 + $0x64] sm:$0xf]
  %v39 = vld [vmem:[%s1 + $0x68] sm:$0xf]
  %v40 = vld [vmem:[%s1 + $0x6c] sm:$0xf]
  %v41 = vld [vmem:[%s1 + $0x70] sm:$0xf]
  %v42 = vld [vmem:[%s1 + $0x74] sm:$0xf]
  %v43 = vld [vmem:[%s1 + $0x78] sm:$0xf]
  %v44 = vld [vmem:[%s1 + $0x7c] sm:$0xf]
  %v45 = vld [vmem:[%s1 + $0x80] sm:$0xf]
  %v46 = vld [vmem:[%s1 + $0x84] sm:$0xf]
  %v47 = vld [vmem:[%s1 + $0x88] sm:$0xf]
  %v48 = vld [vmem:[%s1 + $0x8c] sm:$0xf]
  %v49 = vld [vmem:[%s1 + $0x90] sm:$0xf]
  %v50 = vld [vmem:[%s1 + $0x94] sm:$0xf]
  %v51 = vld [vmem:[%s1 + $0x98] sm:$0xf]
  %v52 = vld [vmem:[%s1 + $0x9c] sm:$0xf]
  %v53 = vld [vmem:[%s1 + $0xa0] sm:$0xf]
  %v54 = vld [vmem:[%s1 + $0xa4] sm:$0xf]
  %v55 = vld [vmem:[%s1 + $0xa8] sm:$0xf]
  %v56 = vld [vmem:[%s1 + $0xac] sm:$0xf]
  %v57 = vld [vmem:[%s1 + $0xb0] sm:$0xf]
  %v58 = vld [vmem:[%s1 + $0xb4] sm:$0xf]
  %v59 = vld [vmem:[%s1 + $0xb8] sm:$0xf]
  %v60 = vld [vmem:[%s1 + $0xbc] sm:$0xf]
  %v61 = vld [vmem:[%s1 + $0xc0] sm:$0xf]
  %v62 = vld [vmem:[%s1 + $0xc4] sm:$0xf]
  %v63 = vld [vmem:[%s1 + $0xc8] sm:$0xf]
  %v64 = vld [vmem:[%s1 + $0xcc] sm:$0xf]
  %v65 = vld [vmem:[%s1 + $0xd0] sm:$0xf]
  %v66 = vld [vmem:[%s1 + $0xd4] sm:$0xf]
  %v67 = vld [vmem:[%s1 + $0xd8] sm:$0xf]
  %v68 = vld [vmem:[%s1 + $0xdc] sm:$0xf]
  %v69 = vld [vmem:[%s1 + $0xe0] sm:$0xf]
  %v70 = vld [vmem:[%s1 + $0xe4] sm:$0xf]
  %v71 = vld [vmem:[%s1 + $0xe8] sm:$0xf]
  %v72 = vld [vmem:[%s1 + $0xec] sm:$0xf]
  %v73 = vld [vmem:[%s1 + $0xf0] sm:$0xf]
  %v74 = vld [vmem:[%s1 + $0xf4] sm:$0xf]
  %v75 = vld [vmem:[%s1 + $0xf8] sm:$0xf]
  %v76 = vld [vmem:[%s1 + $0xfc] sm:$0xf]
  %v79 = vunpack.c.l.s4 1966171168
  %v80 = vunpack.c.0.s8 %v79
  %v81 = vlaneseq
  %v82 = vshrl.u32 %v81, 7
  %v83 = vsub.s32 %v80, %v82
  %v84 = vrot.slane %v12, %v83
  %v85 = vcombine.high %v84, %v84
  %v87 = vunpack.c.l.s4 1966171168
  %v88 = vunpack.c.0.s8 %v87
  %v89 = vlaneseq
  %v90 = vshrl.u32 %v89, 7
  %v91 = vsub.s32 %v88, %v90
  %v92 = vrot.slane %v84, %v91
  %v94 = vunpack.c.l.s4 1966171168
  %v95 = vunpack.c.0.s8 %v94
  %v96 = vlaneseq
  %v97 = vshrl.u32 %v96, 7
  %v98 = vsub.s32 %v95, %v97
  %v99 = vrot.slane %v85, %v98
  %v100 = vcombine.high %v92, %v92
  %v101 = vcombine.high %v99, %v99
  %v170 = vunpack.c.l.b16 %v13
  %v171 = vunpack.c.l.b16 %v14
  %v172 = vunpack.c.l.b16 %v15
  %v173 = vunpack.c.l.b16 %v16
  %v174 = vunpack.c.l.b16 %v17
  %v175 = vunpack.c.l.b16 %v18
  %v176 = vunpack.c.l.b16 %v19
  %v177 = vunpack.c.l.b16 %v20
  %v178 = vunpack.c.l.b16 %v21
  %v179 = vunpack.c.l.b16 %v22
  %v180 = vunpack.c.l.b16 %v23
  %v181 = vunpack.c.l.b16 %v24
  %v182 = vunpack.c.l.b16 %v25
  %v183 = vunpack.c.l.b16 %v26
  %v184 = vunpack.c.l.b16 %v27
  %v185 = vunpack.c.l.b16 %v28
  %v186 = vunpack.c.l.b16 %v29
  %v187 = vunpack.c.l.b16 %v30
  %v188 = vunpack.c.l.b16 %v31
  %v189 = vunpack.c.l.b16 %v32
  %v190 = vunpack.c.l.b16 %v33
  %v191 = vunpack.c.l.b16 %v34
  %v192 = vunpack.c.l.b16 %v35
  %v193 = vunpack.c.l.b16 %v36
  %v194 = vunpack.c.l.b16 %v37
  %v195 = vunpack.c.l.b16 %v38
  %v196 = vunpack.c.l.b16 %v39
  %v197 = vunpack.c.l.b16 %v40
  %v198 = vunpack.c.l.b16 %v41
  %v199 = vunpack.c.l.b16 %v42
  %v200 = vunpack.c.l.b16 %v43
  %v201 = vunpack.c.l.b16 %v44
  %v202 = vunpack.c.l.b16 %v45
  %v203 = vunpack.c.l.b16 %v46
  %v204 = vunpack.c.l.b16 %v47
  %v205 = vunpack.c.l.b16 %v48
  %v206 = vunpack.c.l.b16 %v49
  %v207 = vunpack.c.l.b16 %v50
  %v208 = vunpack.c.l.b16 %v51
  %v209 = vunpack.c.l.b16 %v52
  %v210 = vunpack.c.l.b16 %v53
  %v211 = vunpack.c.l.b16 %v54
  %v212 = vunpack.c.l.b16 %v55
  %v213 = vunpack.c.l.b16 %v56
  %v214 = vunpack.c.l.b16 %v57
  %v215 = vunpack.c.l.b16 %v58
  %v216 = vunpack.c.l.b16 %v59
  %v217 = vunpack.c.l.b16 %v60
  %v218 = vunpack.c.l.b16 %v61
  %v219 = vunpack.c.l.b16 %v62
  %v220 = vunpack.c.l.b16 %v63
  %v221 = vunpack.c.l.b16 %v64
  %v222 = vunpack.c.l.b16 %v65
  %v223 = vunpack.c.l.b16 %v66
  %v224 = vunpack.c.l.b16 %v67
  %v225 = vunpack.c.l.b16 %v68
  %v226 = vunpack.c.l.b16 %v69
  %v227 = vunpack.c.l.b16 %v70
  %v228 = vunpack.c.l.b16 %v71
  %v229 = vunpack.c.l.b16 %v72
  %v230 = vunpack.c.l.b16 %v73
  %v231 = vunpack.c.l.b16 %v74
  %v232 = vunpack.c.l.b16 %v75
  %v233 = vunpack.c.l.b16 %v76
  %v234 = vpack.c.b16 %v171, %v170
  %v235 = vpack.c.b16 %v173, %v172
  %v236 = vpack.c.b16 %v175, %v174
  %v237 = vpack.c.b16 %v177, %v176
  %v238 = vpack.c.b16 %v179, %v178
  %v239 = vpack.c.b16 %v181, %v180
  %v240 = vpack.c.b16 %v183, %v182
  %v241 = vpack.c.b16 %v185, %v184
  %v242 = vpack.c.b16 %v187, %v186
  %v243 = vpack.c.b16 %v189, %v188
  %v244 = vpack.c.b16 %v191, %v190
  %v245 = vpack.c.b16 %v193, %v192
  %v246 = vpack.c.b16 %v195, %v194
  %v247 = vpack.c.b16 %v197, %v196
  %v248 = vpack.c.b16 %v199, %v198
  %v249 = vpack.c.b16 %v201, %v200
  %v250 = vpack.c.b16 %v203, %v202
  %v251 = vpack.c.b16 %v205, %v204
  %v252 = vpack.c.b16 %v207, %v206
  %v253 = vpack.c.b16 %v209, %v208
  %v254 = vpack.c.b16 %v211, %v210
  %v255 = vpack.c.b16 %v213, %v212
  %v256 = vpack.c.b16 %v215, %v214
  %v257 = vpack.c.b16 %v217, %v216
  %v258 = vpack.c.b16 %v219, %v218
  %v259 = vpack.c.b16 %v221, %v220
  %v260 = vpack.c.b16 %v223, %v222
  %v261 = vpack.c.b16 %v225, %v224
  %v262 = vpack.c.b16 %v227, %v226
  %v263 = vpack.c.b16 %v229, %v228
  %v264 = vpack.c.b16 %v231, %v230
  %v265 = vpack.c.b16 %v233, %v232
  %298 = vmatprep.subr.bf16.mxu0 0
  %299 = vmatpush1.bf16.msra.mxu0 %v241
  %300 = vmatprep.subr.bf16.mxu0 0
  %301 = vmatpush1.bf16.msra.mxu0 %v240
  %302 = vmatprep.subr.bf16.mxu0 0
  %303 = vmatpush1.bf16.msra.mxu0 %v239
  %304 = vmatprep.subr.bf16.mxu0 0
  %305 = vmatpush1.bf16.msra.mxu0 %v238
  %306 = vmatprep.subr.bf16.mxu0 0
  %307 = vmatpush1.bf16.msra.mxu0 %v237
  %308 = vmatprep.subr.bf16.mxu0 0
  %309 = vmatpush1.bf16.msra.mxu0 %v236
  %310 = vmatprep.subr.bf16.mxu0 0
  %311 = vmatpush1.bf16.msra.mxu0 %v235
  %312 = vmatprep.subr.bf16.mxu0 0
  %313 = vmatpush1.bf16.msra.mxu0 %v234
  %314 = vmatprep.subr.bf16.mxu0 0
  %315 = vmatpush2.bf16.msra.mxu0 %v249
  %316 = vmatprep.subr.bf16.mxu0 0
  %317 = vmatpush2.bf16.msra.mxu0 %v248
  %318 = vmatprep.subr.bf16.mxu0 0
  %319 = vmatpush2.bf16.msra.mxu0 %v247
  %320 = vmatprep.subr.bf16.mxu0 0
  %321 = vmatpush2.bf16.msra.mxu0 %v246
  %322 = vmatprep.subr.bf16.mxu0 0
  %323 = vmatpush2.bf16.msra.mxu0 %v245
  %324 = vmatprep.subr.bf16.mxu0 0
  %325 = vmatpush2.bf16.msra.mxu0 %v244
  %326 = vmatprep.subr.bf16.mxu0 0
  %327 = vmatpush2.bf16.msra.mxu0 %v243
  %328 = vmatprep.subr.bf16.mxu0 0
  %329 = vmatpush2.bf16.msra.mxu0 %v242
  %330 = vmatprep.mubr.bf16.mxu0 %v99
  %331 = vmatmul.mubr.bf16.gmra.mxu0 %v92
  %v332 = vpop.f32.mrf.mxu0
  %v333 = vadd.f32 0.0, %v332
  %v334 = vpop.f32.mrf.mxu0
  %v335 = vpop.f32.mrf.mxu0
  %v336 = vpop.f32.mrf.mxu0
  %337 = vdwg.mxu0
  %338 = vmatprep.subr.bf16.mxu0 0
  %339 = vmatpush1.bf16.msra.mxu0 %v257
  %340 = vmatprep.subr.bf16.mxu0 0
  %341 = vmatpush1.bf16.msra.mxu0 %v256
  %342 = vmatprep.subr.bf16.mxu0 0
  %343 = vmatpush1.bf16.msra.mxu0 %v255
  %344 = vmatprep.subr.bf16.mxu0 0
  %345 = vmatpush1.bf16.msra.mxu0 %v254
  %346 = vmatprep.subr.bf16.mxu0 0
  %347 = vmatpush1.bf16.msra.mxu0 %v253
  %348 = vmatprep.subr.bf16.mxu0 0
  %349 = vmatpush1.bf16.msra.mxu0 %v252
  %350 = vmatprep.subr.bf16.mxu0 0
  %351 = vmatpush1.bf16.msra.mxu0 %v251
  %352 = vmatprep.subr.bf16.mxu0 0
  %353 = vmatpush1.bf16.msra.mxu0 %v250
  %354 = vmatprep.subr.bf16.mxu0 0
  %355 = vmatpush2.bf16.msra.mxu0 %v265
  %356 = vmatprep.subr.bf16.mxu0 0
  %357 = vmatpush2.bf16.msra.mxu0 %v264
  %358 = vmatprep.subr.bf16.mxu0 0
  %359 = vmatpush2.bf16.msra.mxu0 %v263
  %360 = vmatprep.subr.bf16.mxu0 0
  %361 = vmatpush2.bf16.msra.mxu0 %v262
  %362 = vmatprep.subr.bf16.mxu0 0
  %363 = vmatpush2.bf16.msra.mxu0 %v261
  %364 = vmatprep.subr.bf16.mxu0 0
  %365 = vmatpush2.bf16.msra.mxu0 %v260
  %366 = vmatprep.subr.bf16.mxu0 0
  %367 = vmatpush2.bf16.msra.mxu0 %v259
  %368 = vmatprep.subr.bf16.mxu0 0
  %369 = vmatpush2.bf16.msra.mxu0 %v258
  %370 = vmatprep.mubr.bf16.mxu0 %v101
  %371 = vmatmul.mubr.bf16.gmra.mxu0 %v100
  %v372 = vpop.f32.mrf.mxu0
  %v373 = vadd.f32 %v333, %v372
  %v374 = vpop.f32.mrf.mxu0
  %v375 = vpop.f32.mrf.mxu0
  %v376 = vpop.f32.mrf.mxu0
  %377 = vdwg.mxu0
  %v378 = vsub.f32 0.0, %v373
  %v379 = vmul.f32 %v378, 1.442695
  %v380 = vpow.pop %v379
  %v381 = vadd.f32 %v380, 1.0
  %v382 = vrcp.pop %v381
  %383 = vst [vmem:[%s2] sm:$0x3] %v382
  // Predicated region
  $region10: #{discriminator_forward.11} parent=0 // pred_check
    _
  $region11: #{discriminator_forward.11} parent=0 // pred_check_branch
    %385 = sbr.rel (0) target = $region13
  $region12: #{discriminator_forward.11} parent=0 // pred_region
    _
  $region13: #{discriminator_forward.11} parent=0 // pred_fallthru
    _
  // Predicated region
  $region14: #{discriminator_forward.11} parent=0 // pred_check
    _
  $region15: #{discriminator_forward.11} parent=0 // pred_check_branch
    %387 = sbr.rel (0) target = $region17
  $region16: #{discriminator_forward.11} parent=0 // pred_region
    _
  $region17: #{discriminator_forward.11} parent=0 // pred_fallthru
    _

</llo_original>
